<compile_context>
chip_gen: v6e
topology: v6e:2x2x1
jax: 0.10.0
libtpu: 0.0.40
codegen_flags: <defaults>
</compile_context>

<pallas_src>
import math
import functools

import jax
import jax.numpy as jnp
from jax import lax
from jax.experimental import pallas as pl
from jax.experimental.pallas import tpu as pltpu


# ----------------------------------------------------------------------------
# Tiling helpers
# ----------------------------------------------------------------------------
def _pick_tile(dim, target, multiple):
    """Largest divisor of `dim` that is <= target and a multiple of `multiple`;
    falls back to the full dim (which always satisfies the (8,128) rule)."""
    if dim <= target:
        return dim
    t = (target // multiple) * multiple
    while t >= multiple:
        if dim % t == 0:
            return t
        t -= multiple
    return dim


# ----------------------------------------------------------------------------
# Pallas kernels
# ----------------------------------------------------------------------------
def _mm_bias_kernel(x_ref, w_ref, b_ref, o_ref, acc_ref):
    @pl.when(pl.program_id(2) == 0)
    def _():
        acc_ref[...] = jnp.zeros_like(acc_ref)

    acc_ref[...] += jnp.dot(x_ref[...], w_ref[...],
                            preferred_element_type=jnp.float32)

    @pl.when(pl.program_id(2) == pl.num_programs(2) - 1)
    def _():
        o_ref[...] = (acc_ref[...] + b_ref[...]).astype(o_ref.dtype)


def _mm_bias_res_kernel(x_ref, w_ref, b_ref, r_ref, o_ref, acc_ref):
    @pl.when(pl.program_id(2) == 0)
    def _():
        acc_ref[...] = jnp.zeros_like(acc_ref)

    acc_ref[...] += jnp.dot(x_ref[...], w_ref[...],
                            preferred_element_type=jnp.float32)

    @pl.when(pl.program_id(2) == pl.num_programs(2) - 1)
    def _():
        o_ref[...] = (acc_ref[...] + b_ref[...] + r_ref[...]).astype(o_ref.dtype)


def _max_kernel(a_ref, b_ref, o_ref):
    o_ref[...] = jnp.maximum(a_ref[...], b_ref[...])


def _make_pool_kernel(kk):
    def kernel(x_ref, o_ref):
        # x_ref: (rows_tile, kk, C) pooling taps; pure elementwise max chain (VPU).
        m = x_ref[:, 0, :]
        for t in range(1, kk):
            m = jnp.maximum(m, x_ref[:, t, :])
        o_ref[...] = m
    return kernel


# ----------------------------------------------------------------------------
# Pallas wrappers
# ----------------------------------------------------------------------------
def pallas_matmul_bias(x, w, b, residual=None,
                       tm_target=256, tn_target=512, tk_target=1536):
    """y = x @ w + b (+ residual), tiled over (M, N, K) with a VMEM f32 accumulator."""
    M, K = x.shape
    K2, Nout = w.shape
    assert K == K2
    tm = _pick_tile(M, tm_target, 8)
    tn = _pick_tile(Nout, tn_target, 128)
    tk = _pick_tile(K, tk_target, 128)
    grid = (M // tm, Nout // tn, K // tk)

    b2 = b.reshape(1, Nout).astype(jnp.float32)
    in_specs = [
        pl.BlockSpec((tm, tk), lambda i, j, k: (i, k)),
        pl.BlockSpec((tk, tn), lambda i, j, k: (k, j)),
        pl.BlockSpec((1, tn), lambda i, j, k: (0, j)),
    ]
    args = [x.astype(jnp.float32), w.astype(jnp.float32), b2]
    if residual is None:
        kernel = _mm_bias_kernel
    else:
        kernel = _mm_bias_res_kernel
        in_specs.append(pl.BlockSpec((tm, tn), lambda i, j, k: (i, j)))
        args.append(residual.astype(jnp.float32))

    return pl.pallas_call(
        kernel,
        out_shape=jax.ShapeDtypeStruct((M, Nout), jnp.float32),
        grid=grid,
        in_specs=in_specs,
        out_specs=pl.BlockSpec((tm, tn), lambda i, j, k: (i, j)),
        scratch_shapes=[pltpu.VMEM((tm, tn), jnp.float32)],
        compiler_params=pltpu.CompilerParams(
            dimension_semantics=("parallel", "parallel", "arbitrary")),
    )(*args)


def pallas_eltwise_max(a2d, b2d):
    """Elementwise max of two (rows, C) arrays (agent feature max-fusion)."""
    M, C = a2d.shape
    tm = _pick_tile(M, 1024, 8)
    return pl.pallas_call(
        _max_kernel,
        out_shape=jax.ShapeDtypeStruct((M, C), jnp.float32),
        grid=(M // tm,),
        in_specs=[pl.BlockSpec((tm, C), lambda i: (i, 0)),
                  pl.BlockSpec((tm, C), lambda i: (i, 0))],
        out_specs=pl.BlockSpec((tm, C), lambda i: (i, 0)),
        compiler_params=pltpu.CompilerParams(dimension_semantics=("parallel",)),
    )(a2d.astype(jnp.float32), b2d.astype(jnp.float32))


def _im2col_3x3(x_nhwc):
    """3x3 / stride 1 / pad 1 patch matrix.  Column ordering (dy, dx, cin) matches
    an HWIO weight reshaped to (9*Cin, Cout)."""
    # TODO(synk): im2col / pad are layout plumbing done as XLA ops; a fused in-kernel halo
    # DMA would avoid materializing the 9x patch matrix in HBM (tiny at these shapes).
    N, H, W, Cin = x_nhwc.shape
    xp = jnp.pad(x_nhwc, ((0, 0), (1, 1), (1, 1), (0, 0)))
    cols = [xp[:, dy:dy + H, dx:dx + W, :] for dy in range(3) for dx in range(3)]
    return jnp.concatenate(cols, axis=-1).reshape(N * H * W, 9 * Cin)


def pallas_conv3x3(x_nhwc, w_hwio, b, residual=None):
    """3x3 / stride 1 / pad 1 conv as im2col + tiled MXU matmul (+ fused bias/residual)."""
    N, H, W, Cin = x_nhwc.shape
    Cout = w_hwio.shape[-1]
    patches = _im2col_3x3(x_nhwc)
    w_mat = w_hwio.reshape(9 * Cin, Cout)
    r = None if residual is None else residual.reshape(N * H * W, Cout)
    out = pallas_matmul_bias(patches, w_mat, b, residual=r)
    return out.reshape(N, H, W, Cout)


def pallas_convtranspose(x_nhwc, wt, b, k):
    """ConvTranspose2d with kernel_size == stride == k (non-overlapping): a single matmul
    (Cin -> k*k*Cout) per input pixel followed by a pixel shuffle. wt: (Cin, Cout, k, k)."""
    N, h, w_, Cin = x_nhwc.shape
    Cout = wt.shape[1]
    w_mat = jnp.transpose(wt, (0, 2, 3, 1)).reshape(Cin, k * k * Cout)  # cols: (p, q, cout)
    b_tiled = jnp.tile(b, k * k)
    out = pallas_matmul_bias(x_nhwc.reshape(N * h * w_, Cin), w_mat, b_tiled)
    out = out.reshape(N, h, w_, k, k, Cout)
    out = jnp.transpose(out, (0, 1, 3, 2, 4, 5)).reshape(N, h * k, w_ * k, Cout)
    return out


def pallas_maxpool(x_nhwc, k):
    """MaxPool2d with kernel_size == stride == k (non-overlapping)."""
    N, H, W, C = x_nhwc.shape
    Ho, Wo = H // k, W // k
    patches = x_nhwc.reshape(N, Ho, k, Wo, k, C)
    patches = jnp.transpose(patches, (0, 1, 3, 2, 4, 5)).reshape(N * Ho * Wo, k * k, C)
    M = N * Ho * Wo
    tm = _pick_tile(M, 1024, 8)
    out = pl.pallas_call(
        _make_pool_kernel(k * k),
        out_shape=jax.ShapeDtypeStruct((M, C), jnp.float32),
        grid=(M // tm,),
        in_specs=[pl.BlockSpec((tm, k * k, C), lambda i: (i, 0, 0))],
        out_specs=pl.BlockSpec((tm, C), lambda i: (i, 0)),
        compiler_params=pltpu.CompilerParams(dimension_semantics=("parallel",)),
    )(patches.astype(jnp.float32))
    return out.reshape(N, Ho, Wo, C)


# ----------------------------------------------------------------------------
# Parameter init (xavier-uniform conv weights, zero bias — mirrors _reset_parameters)
# ----------------------------------------------------------------------------
def init_ipsa_params(key, in_channels, n_levels=3):
    assert n_levels == 3, "IPSA only supports n_levels == 3 (as in the PyTorch module)"
    Cenc = in_channels // 3
    keys = jax.random.split(key, 7)

    def xavier(k, shape, fan_in, fan_out):
        a = math.sqrt(6.0 / (fan_in + fan_out))
        return jax.random.uniform(k, shape, jnp.float32, -a, a)

    p = {}
    # fusion_encoder: Conv2d(C -> Cenc, 3x3)   — HWIO layout (3,3,Cin,Cout)
    p["w_enc"] = xavier(keys[0], (3, 3, in_channels, Cenc), in_channels * 9, Cenc * 9)
    p["b_enc"] = jnp.zeros((Cenc,), jnp.float32)
    # ConvTranspose2d weights in torch layout (Cin, Cout, kH, kW)
    p["wt_up2_b2"] = xavier(keys[1], (Cenc, Cenc, 2, 2), Cenc * 4, Cenc * 4)   # block2_inc2x
    p["bt_up2_b2"] = jnp.zeros((Cenc,), jnp.float32)
    p["wt_up2_b3"] = xavier(keys[2], (Cenc, Cenc, 2, 2), Cenc * 4, Cenc * 4)   # block3_inc2x
    p["bt_up2_b3"] = jnp.zeros((Cenc,), jnp.float32)
    p["wt_up4_b3"] = xavier(keys[3], (Cenc, Cenc, 4, 4), Cenc * 16, Cenc * 16)  # block3_inc4x
    p["bt_up4_b3"] = jnp.zeros((Cenc,), jnp.float32)
    # ms_fea_agg[lvl]: Conv2d(3*Cenc -> C, 3x3)
    for lvl in range(n_levels):
        p[f"w_agg{lvl}"] = xavier(keys[4 + lvl], (3, 3, 3 * Cenc, in_channels),
                                  3 * Cenc * 9, in_channels * 9)
        p[f"b_agg{lvl}"] = jnp.zeros((in_channels,), jnp.float32)
    return p


# ----------------------------------------------------------------------------
# IPSA forward (Pallas-backed)
# ----------------------------------------------------------------------------
def ipsa_forward(params, ego_agent_fea, collaborator_fea, spatial_shapes,
                 in_channels, use_pyramid_conv=True):
    n_levels = len(spatial_shapes)
    Nb = ego_agent_fea[0].shape[0]
    C = in_channels
    Cenc = C // 3

    rows_per_level = [Nb * H * W for (H, W) in spatial_shapes]
    offs = [0]
    for r in rows_per_level:
        offs.append(offs[-1] + r)

    # --- 1. elementwise max fusion: all levels batched into ONE pallas_call -------------
    ego_rows, collab_rows = [], []
    for lvl, (H, W) in enumerate(spatial_shapes):
        scale = 2 ** (lvl + 1)
        # (N, H*W, C).transpose(1,2).unflatten == channels-last reshape (N,H,W,C)
        collab_rows.append(
            collaborator_fea[f"temporalAttn_result_{scale}x"].reshape(Nb * H * W, C))
        ego_rows.append(
            jnp.transpose(ego_agent_fea[lvl], (0, 2, 3, 1)).reshape(Nb * H * W, C))
    mx_rows = pallas_eltwise_max(jnp.concatenate(ego_rows, axis=0),
                                 jnp.concatenate(collab_rows, axis=0))
    agents_max = [mx_rows[offs[l]:offs[l + 1]].reshape(Nb, spatial_shapes[l][0],
                                                       spatial_shapes[l][1], C)
                  for l in range(n_levels)]

    if not use_pyramid_conv:
        return [jnp.transpose(m, (0, 3, 1, 2)) for m in agents_max]

    assert n_levels == 3

    # --- 2. shared fusion_encoder conv: one batched MXU matmul over all levels ----------
    patch_rows = jnp.concatenate([_im2col_3x3(m) for m in agents_max], axis=0)
    enc_rows = pallas_matmul_bias(patch_rows, params["w_enc"].reshape(9 * C, Cenc),
                                  params["b_enc"])
    sampling = [enc_rows[offs[l]:offs[l + 1]].reshape(Nb, spatial_shapes[l][0],
                                                      spatial_shapes[l][1], Cenc)
                for l in range(n_levels)]

    # --- 3. cross-scale resampling of the encoded pyramid -------------------------------
    up2_b2 = pallas_convtranspose(sampling[1], params["wt_up2_b2"], params["bt_up2_b2"], 2)
    up4_b3 = pallas_convtranspose(sampling[2], params["wt_up4_b3"], params["bt_up4_b3"], 4)
    up2_b3 = pallas_convtranspose(sampling[2], params["wt_up2_b3"], params["bt_up2_b3"], 2)
    dn2_s0 = pallas_maxpool(sampling[0], 2)
    dn4_s0 = pallas_maxpool(sampling[0], 4)
    dn2_s1 = pallas_maxpool(sampling[1], 2)

    cats = [
        jnp.concatenate([sampling[0], up2_b2, up4_b3], axis=-1),      # lvl 0
        jnp.concatenate([dn2_s0, sampling[1], up2_b3], axis=-1),      # lvl 1
        jnp.concatenate([dn4_s0, dn2_s1, sampling[2]], axis=-1),      # lvl 2
    ]

    # --- 4. per-level aggregation conv with residual fused into the matmul epilogue -----
    outs = []
    for lvl in range(n_levels):
        fused = pallas_conv3x3(cats[lvl], params[f"w_agg{lvl}"], params[f"b_agg{lvl}"],
                               residual=agents_max[lvl])
        outs.append(jnp.transpose(fused, (0, 3, 1, 2)))               # back to NCHW
    return outs


# ----------------------------------------------------------------------------
# Pure-JAX reference (same semantics as the PyTorch module) for validation
# ----------------------------------------------------------------------------
def reference_forward(params, ego_agent_fea, collaborator_fea, spatial_shapes,
                      in_channels, use_pyramid_conv=True):
    C = in_channels
    Nb = ego_agent_fea[0].shape[0]
    hi = lax.Precision.HIGHEST

    def conv3x3(x, w_hwio, b):
        y = lax.conv_general_dilated(x, w_hwio, window_strides=(1, 1),
                                     padding=((1, 1), (1, 1)),
                                     dimension_numbers=("NHWC", "HWIO", "NHWC"),
                                     precision=hi)
        return y + b

    def up(x, wt, b, k):
        y = jnp.einsum("nhwi,iopq->nhwpqo", x, wt, precision=hi)
        N_, h, w_ = x.shape[0], x.shape[1], x.shape[2]
        y = jnp.transpose(y, (0, 1, 3, 2, 4, 5)).reshape(N_, h * k, w_ * k, wt.shape[1])
        return y + b

    def pool(x, k):
        return lax.reduce_window(x, -jnp.inf, lax.max,
                                 (1, k, k, 1), (1, k, k, 1), "VALID")

    agents_max, sampling = [], []
    for lvl, (H, W) in enumerate(spatial_shapes):
        scale = 2 ** (lvl + 1)
        collab_nhwc = collaborator_fea[f"temporalAttn_result_{scale}x"].reshape(Nb, H, W, C)
        ego_nhwc = jnp.transpose(ego_agent_fea[lvl], (0, 2, 3, 1))
        mx = jnp.maximum(ego_nhwc, collab_nhwc)
        agents_max.append(mx)
        if use_pyramid_conv:
            sampling.append(conv3x3(mx, params["w_enc"], params["b_enc"]))

    if not use_pyramid_conv:
        return [jnp.transpose(m, (0, 3, 1, 2)) for m in agents_max]

    cats = [
        jnp.concatenate([sampling[0],
                         up(sampling[1], params["wt_up2_b2"], params["bt_up2_b2"], 2),
                         up(sampling[2], params["wt_up4_b3"], params["bt_up4_b3"], 4)], axis=-1),
        jnp.concatenate([pool(sampling[0], 2), sampling[1],
                         up(sampling[2], params["wt_up2_b3"], params["bt_up2_b3"], 2)], axis=-1),
        jnp.concatenate([pool(sampling[0], 4), pool(sampling[1], 2), sampling[2]], axis=-1),
    ]
    outs = []
    for lvl in range(3):
        fused = conv3x3(cats[lvl], params[f"w_agg{lvl}"], params[f"b_agg{lvl}"]) + agents_max[lvl]
        outs.append(jnp.transpose(fused, (0, 3, 1, 2)))
    return outs


# ----------------------------------------------------------------------------
if __name__ == "__main__":
    # in_channels must be divisible by 3 (encode_channel = C // 3); 384 gives lane-dense
    # (>=128) channel dims everywhere while keeping the spatial extents small.
    in_channels = 384
    n_levels = 3
    spatial_shapes = [(16, 16), (8, 8), (4, 4)]   # scale_list for 2x / 4x / 8x levels
    Nb = 2

    key = jax.random.PRNGKey(0)
    kp, *ks = jax.random.split(key, 1 + 2 * n_levels)
    params = init_ipsa_params(kp, in_channels, n_levels)

    ego_agent_fea = []
    collaborator_fea = {}
    for lvl, (H, W) in enumerate(spatial_shapes):
        ego_agent_fea.append(
            jax.random.normal(ks[2 * lvl], (Nb, in_channels, H, W), jnp.float32))
        collaborator_fea[f"temporalAttn_result_{2 ** (lvl + 1)}x"] = \
            jax.random.normal(ks[2 * lvl + 1], (Nb, H * W, in_channels), jnp.float32)

    fwd = functools.partial(ipsa_forward, params, ego_agent_fea, collaborator_fea,
                            spatial_shapes, in_channels, use_pyramid_conv=True)
    outs = jax.block_until_ready(fwd())

    refs = jax.block_until_ready(
        reference_forward(params, ego_agent_fea, collaborator_fea,
                          spatial_shapes, in_channels, use_pyramid_conv=True))

    assert len(outs) == n_levels
    for lvl, (H, W) in enumerate(spatial_shapes):
        assert outs[lvl].shape == (Nb, in_channels, H, W)
        assert bool(jnp.all(jnp.isfinite(outs[lvl])))
        err = float(jnp.max(jnp.abs(outs[lvl] - refs[lvl])))
        assert bool(jnp.allclose(outs[lvl], refs[lvl], atol=5e-3, rtol=5e-3)), \
            f"level {lvl} max abs diff {err}"

    print("KERNEL_OK")
</pallas_src>

<mosaic_0001>
module attributes {stable_mosaic.version = 11 : i64} {
  func.func @_max_kernel(%arg0: i32, %arg1: memref<672x384xf32, #tpu.memory_space<vmem>>, %arg2: memref<672x384xf32, #tpu.memory_space<vmem>>, %arg3: memref<672x384xf32, #tpu.memory_space<vmem>>) attributes {dimension_semantics = [#tpu.dimension_semantics<parallel>], iteration_bounds = array<i64: 1>, scalar_prefetch = 0 : i64, scratch_operands = 0 : i64, tpu.core_type = #tpu.core_type<tc>, window_params = [{transform_indices = @transform_0, window_bounds = array<i64: 672, 384>}, {transform_indices = @transform_1, window_bounds = array<i64: 672, 384>}, {transform_indices = @transform_2, window_bounds = array<i64: 672, 384>}]} {
    %c0 = arith.constant 0 : index
    %c0_0 = arith.constant 0 : index
    %0 = vector.load %arg1[%c0, %c0_0] : memref<672x384xf32, #tpu.memory_space<vmem>>, vector<672x384xf32>
    %c0_1 = arith.constant 0 : index
    %c0_2 = arith.constant 0 : index
    %1 = vector.load %arg2[%c0_1, %c0_2] : memref<672x384xf32, #tpu.memory_space<vmem>>, vector<672x384xf32>
    %2 = arith.maximumf %0, %1 : vector<672x384xf32>
    %c0_3 = arith.constant 0 : index
    %c0_4 = arith.constant 0 : index
    %3 = vector.load %arg3[%c0_3, %c0_4] : memref<672x384xf32, #tpu.memory_space<vmem>>, vector<672x384xf32>
    tpu.vector_store %arg3[%c0_3, %c0_4], %2 {strides = array<i32>} : memref<672x384xf32, #tpu.memory_space<vmem>>, vector<672x384xf32>,
    return
  }
  func.func @transform_0(%arg0: i32) -> (i32, i32) {
    %c0_i32 = arith.constant 0 : i32
    %c0_i32_0 = arith.constant 0 : i32
    return %arg0, %c0_i32 : i32, i32
  }
  func.func @transform_1(%arg0: i32) -> (i32, i32) {
    %c0_i32 = arith.constant 0 : i32
    %c0_i32_0 = arith.constant 0 : i32
    return %arg0, %c0_i32 : i32, i32
  }
  func.func @transform_2(%arg0: i32) -> (i32, i32) {
    %c0_i32 = arith.constant 0 : i32
    %c0_i32_0 = arith.constant 0 : i32
    return %arg0, %c0_i32 : i32, i32
  }
}

</mosaic_0001>

<llo_original>
// kernel: tpu_custom_call.1
$region0: #{tpu_custom_call.1}
  #allocation0 [shape = 'u32[]', space=smem, size = 0x4, offset = 0x4, fixed_abs, tag = 'smem constant byte address 0x4 - core index']
  #allocation1 [shape = 'u32[144,128]{1,0:T(1,128)}', space=vmem, size = 0x12000, scoped, tag = 'internal scratch']
  %s0 = inlined_call_operand.hbm [shape: f32[672,384], index: 0, kind: input, shape index: {}]
  %s1 = inlined_call_operand.hbm [shape: f32[672,384], index: 1, kind: input, shape index: {}]
  %s2 = inlined_call_operand.hbm [shape: f32[672,384], index: 2, kind: output, shape index: {}]
  %s3 = sld [smem:[#allocation0]]
  $region26: #{tpu_custom_call.1} parent=0
    _
  %s5 = ssub.s32 1, %s3
  %s6 = scalar_select 0, %s5, %s3
  $region1: #{tpu_custom_call.1} parent=0
    #allocation2 [shape = 'u8[1032192]{0}', space=vmem, size = 0xfc000, scoped, tag = 'input window, operand 0, single buffered']
    #allocation3 [shape = 's32[1]{0}', space=sflag, size = 0x4, scoped, tag = 'scoped memory for tpu_custom_call.1']
    #allocation4 [shape = 's32[1]{0}', space=sflag, size = 0x4, scoped, tag = 'scoped memory for tpu_custom_call.1']
    #allocation5 [shape = 'u8[1032192]{0}', space=vmem, size = 0xfc000, scoped, tag = 'input window, operand 1, single buffered']
    #allocation6 [shape = 's32[1]{0}', space=sflag, size = 0x4, scoped, tag = 'scoped memory for tpu_custom_call.1']
    #allocation7 [shape = 'u8[1032192]{0}', space=vmem, size = 0xfc000, scoped, tag = 'output window, operand 0, single buffered']
    %7 = vsyncpa [#allocation3], 0
    %8 = vsyncpa [#allocation6], 0
    %9 = vsyncpa [#allocation4], 0
    // Predicated region
    $region2: #{tpu_custom_call.1} parent=1 // pred_check
      _
    $region3: #{tpu_custom_call.1} parent=1 // pred_check_branch
      %11 = sbr.rel (0) target = $region5
    $region4: #{tpu_custom_call.1} parent=1 // pred_region
      %s13 = ssub.s32 32256, 32256
      %14 = vsyncadd [#allocation3], %s13
      %s15 = sshll.u32 [#allocation2], 4
      %s16 = int_to_ptr.vmem [resolvable:$true] %s15
      %21 = dma.hbm_to_vmem [thread:$0]  %s0, 32256, %s16, [#allocation3], 384, 384, 24
    $region5: #{tpu_custom_call.1} parent=1 // pred_fallthru
      _
    // Predicated region
    $region6: #{tpu_custom_call.1} parent=1 // pred_check
      _
    $region7: #{tpu_custom_call.1} parent=1 // pred_check_branch
      %23 = sbr.rel (0) target = $region9
    $region8: #{tpu_custom_call.1} parent=1 // pred_region
      %s25 = ssub.s32 32256, 32256
      %26 = vsyncadd [#allocation6], %s25
      %s27 = sshll.u32 [#allocation5], 4
      %s28 = int_to_ptr.vmem [resolvable:$true] %s27
      %33 = dma.hbm_to_vmem [thread:$0]  %s1, 32256, %s28, [#allocation6], 384, 384, 24
    $region9: #{tpu_custom_call.1} parent=1 // pred_fallthru
      _
    // Predicated region
    $region10: #{tpu_custom_call.1} parent=1 // pred_check
      _
    $region11: #{tpu_custom_call.1} parent=1 // pred_check_branch
      %35 = sbr.rel (0) target = $region13
    $region12: #{tpu_custom_call.1} parent=1 // pred_region
      %36 = dma.done [#allocation3], 32256
    $region13: #{tpu_custom_call.1} parent=1 // pred_fallthru
      _
    // Predicated region
    $region14: #{tpu_custom_call.1} parent=1 // pred_check
      _
    $region15: #{tpu_custom_call.1} parent=1 // pred_check_branch
      %38 = sbr.rel (0) target = $region17
    $region16: #{tpu_custom_call.1} parent=1 // pred_region
      %39 = dma.done [#allocation6], 32256
    $region17: #{tpu_custom_call.1} parent=1 // pred_fallthru
      _
    %v40 = vld [vmem:[#allocation2] sm:$0xff]
    %v41 = vld [vmem:[#allocation2 + $0x8] sm:$0xff]
    %v42 = vld [vmem:[#allocation2 + $0x10] sm:$0xff]
    %v43 = vld [vmem:[#allocation2 + $0x18] sm:$0xff]
    %v44 = vld [vmem:[#allocation2 + $0x20] sm:$0xff]
    %v45 = vld [vmem:[#allocation2 + $0x28] sm:$0xff]
    %v46 = vld [vmem:[#allocation2 + $0x30] sm:$0xff]
    %v47 = vld [vmem:[#allocation2 + $0x38] sm:$0xff]
    %v48 = vld [vmem:[#allocation2 + $0x40] sm:$0xff]
    %v49 = vld [vmem:[#allocation2 + $0x48] sm:$0xff]
    %v50 = vld [vmem:[#allocation2 + $0x50] sm:$0xff]
    %v51 = vld [vmem:[#allocation2 + $0x58] sm:$0xff]
    %v52 = vld [vmem:[#allocation2 + $0x60] sm:$0xff]
    %v53 = vld [vmem:[#allocation2 + $0x68] sm:$0xff]
    %v54 = vld [vmem:[#allocation2 + $0x70] sm:$0xff]
    %v55 = vld [vmem:[#allocation2 + $0x78] sm:$0xff]
    %v56 = vld [vmem:[#allocation2 + $0x80] sm:$0xff]
    %v57 = vld [vmem:[#allocation2 + $0x88] sm:$0xff]
    %v58 = vld [vmem:[#allocation2 + $0x90] sm:$0xff]
    %v59 = vld [vmem:[#allocation2 + $0x98] sm:$0xff]
    %v60 = vld [vmem:[#allocation2 + $0xa0] sm:$0xff]
    %v61 = vld [vmem:[#allocation2 + $0xa8] sm:$0xff]
    %v62 = vld [vmem:[#allocation2 + $0xb0] sm:$0xff]
    %v63 = vld [vmem:[#allocation2 + $0xb8] sm:$0xff]
    %v64 = vld [vmem:[#allocation2 + $0xc0] sm:$0xff]
    %v65 = vld [vmem:[#allocation2 + $0xc8] sm:$0xff]
    %v66 = vld [vmem:[#allocation2 + $0xd0] sm:$0xff]
    %v67 = vld [vmem:[#allocation2 + $0xd8] sm:$0xff]
    %v68 = vld [vmem:[#allocation2 + $0xe0] sm:$0xff]
    %v69 = vld [vmem:[#allocation2 + $0xe8] sm:$0xff]
    %v70 = vld [vmem:[#allocation2 + $0xf0] sm:$0xff]
    %v71 = vld [vmem:[#allocation2 + $0xf8] sm:$0xff]
    %v72 = vld [vmem:[#allocation2 + $0x100] sm:$0xff]
    %v73 = vld [vmem:[#allocation2 + $0x108] sm:$0xff]
    %v74 = vld [vmem:[#allocation2 + $0x110] sm:$0xff]
    %v75 = vld [vmem:[#allocation2 + $0x118] sm:$0xff]
    %v76 = vld [vmem:[#allocation2 + $0x120] sm:$0xff]
    %v77 = vld [vmem:[#allocation2 + $0x128] sm:$0xff]
    %v78 = vld [vmem:[#allocation2 + $0x130] sm:$0xff]
    %v79 = vld [vmem:[#allocation2 + $0x138] sm:$0xff]
    %v80 = vld [vmem:[#allocation2 + $0x140] sm:$0xff]
    %v81 = vld [vmem:[#allocation2 + $0x148] sm:$0xff]
    %v82 = vld [vmem:[#allocation2 + $0x150] sm:$0xff]
    %v83 = vld [vmem:[#allocation2 + $0x158] sm:$0xff]
    %v84 = vld [vmem:[#allocation2 + $0x160] sm:$0xff]
    %v85 = vld [vmem:[#allocation2 + $0x168] sm:$0xff]
    %v86 = vld [vmem:[#allocation2 + $0x170] sm:$0xff]
    %v87 = vld [vmem:[#allocation2 + $0x178] sm:$0xff]
    %v88 = vld [vmem:[#allocation2 + $0x180] sm:$0xff]
    %v89 = vld [vmem:[#allocation2 + $0x188] sm:$0xff]
    %v90 = vld [vmem:[#allocation2 + $0x190] sm:$0xff]
    %v91 = vld [vmem:[#allocation2 + $0x198] sm:$0xff]
    %v92 = vld [vmem:[#allocation2 + $0x1a0] sm:$0xff]
    %v93 = vld [vmem:[#allocation2 + $0x1a8] sm:$0xff]
    %v94 = vld [vmem:[#allocation2 + $0x1b0] sm:$0xff]
    %v95 = vld [vmem:[#allocation2 + $0x1b8] sm:$0xff]
    %v96 = vld [vmem:[#allocation2 + $0x1c0] sm:$0xff]
    %v97 = vld [vmem:[#allocation2 + $0x1c8] sm:$0xff]
    %v98 = vld [vmem:[#allocation2 + $0x1d0] sm:$0xff]
    %v99 = vld [vmem:[#allocation2 + $0x1d8] sm:$0xff]
    %v100 = vld [vmem:[#allocation2 + $0x1e0] sm:$0xff]
    %v101 = vld [vmem:[#allocation2 + $0x1e8] sm:$0xff]
    %v102 = vld [vmem:[#allocation2 + $0x1f0] sm:$0xff]
    %v103 = vld [vmem:[#allocation2 + $0x1f8] sm:$0xff]
    %v104 = vld [vmem:[#allocation2 + $0x200] sm:$0xff]
    %v105 = vld [vmem:[#allocation2 + $0x208] sm:$0xff]
    %v106 = vld [vmem:[#allocation2 + $0x210] sm:$0xff]
    %v107 = vld [vmem:[#allocation2 + $0x218] sm:$0xff]
    %v108 = vld [vmem:[#allocation2 + $0x220] sm:$0xff]
    %v109 = vld [vmem:[#allocation2 + $0x228] sm:$0xff]
    %v110 = vld [vmem:[#allocation2 + $0x230] sm:$0xff]
    %v111 = vld [vmem:[#allocation2 + $0x238] sm:$0xff]
    %v112 = vld [vmem:[#allocation2 + $0x240] sm:$0xff]
    %v113 = vld [vmem:[#allocation2 + $0x248] sm:$0xff]
    %v114 = vld [vmem:[#allocation2 + $0x250] sm:$0xff]
    %v115 = vld [vmem:[#allocation2 + $0x258] sm:$0xff]
    %v116 = vld [vmem:[#allocation2 + $0x260] sm:$0xff]
    %v117 = vld [vmem:[#allocation2 + $0x268] sm:$0xff]
    %v118 = vld [vmem:[#allocation2 + $0x270] sm:$0xff]
    %v119 = vld [vmem:[#allocation2 + $0x278] sm:$0xff]
    %v120 = vld [vmem:[#allocation2 + $0x280] sm:$0xff]
    %v121 = vld [vmem:[#allocation2 + $0x288] sm:$0xff]
    %v122 = vld [vmem:[#allocation2 + $0x290] sm:$0xff]
    %v123 = vld [vmem:[#allocation2 + $0x298] sm:$0xff]
    %v124 = vld [vmem:[#allocation2 + $0x2a0] sm:$0xff]
    %v125 = vld [vmem:[#allocation2 + $0x2a8] sm:$0xff]
    %v126 = vld [vmem:[#allocation2 + $0x2b0] sm:$0xff]
    %v127 = vld [vmem:[#allocation2 + $0x2b8] sm:$0xff]
    %v128 = vld [vmem:[#allocation2 + $0x2c0] sm:$0xff]
    %v129 = vld [vmem:[#allocation2 + $0x2c8] sm:$0xff]
    %v130 = vld [vmem:[#allocation2 + $0x2d0] sm:$0xff]
    %v131 = vld [vmem:[#allocation2 + $0x2d8] sm:$0xff]
    %v132 = vld [vmem:[#allocation2 + $0x2e0] sm:$0xff]
    %v133 = vld [vmem:[#allocation2 + $0x2e8] sm:$0xff]
    %v134 = vld [vmem:[#allocation2 + $0x2f0] sm:$0xff]
    %v135 = vld [vmem:[#allocation2 + $0x2f8] sm:$0xff]
    %v136 = vld [vmem:[#allocation2 + $0x300] sm:$0xff]
    %v137 = vld [vmem:[#allocation2 + $0x308] sm:$0xff]
    %v138 = vld [vmem:[#allocation2 + $0x310] sm:$0xff]
    %v139 = vld [vmem:[#allocation2 + $0x318] sm:$0xff]
    %v140 = vld [vmem:[#allocation2 + $0x320] sm:$0xff]
    %v141 = vld [vmem:[#allocation2 + $0x328] sm:$0xff]
    %v142 = vld [vmem:[#allocation2 + $0x330] sm:$0xff]
    %v143 = vld [vmem:[#allocation2 + $0x338] sm:$0xff]
    %v144 = vld [vmem:[#allocation2 + $0x340] sm:$0xff]
    %v145 = vld [vmem:[#allocation2 + $0x348] sm:$0xff]
    %v146 = vld [vmem:[#allocation2 + $0x350] sm:$0xff]
    %v147 = vld [vmem:[#allocation2 + $0x358] sm:$0xff]
    %v148 = vld [vmem:[#allocation2 + $0x360] sm:$0xff]
    %v149 = vld [vmem:[#allocation2 + $0x368] sm:$0xff]
    %v150 = vld [vmem:[#allocation2 + $0x370] sm:$0xff]
    %v151 = vld [vmem:[#allocation2 + $0x378] sm:$0xff]
    %v152 = vld [vmem:[#allocation2 + $0x380] sm:$0xff]
    %v153 = vld [vmem:[#allocation2 + $0x388] sm:$0xff]
    %v154 = vld [vmem:[#allocation2 + $0x390] sm:$0xff]
    %v155 = vld [vmem:[#allocation2 + $0x398] sm:$0xff]
    %v156 = vld [vmem:[#allocation2 + $0x3a0] sm:$0xff]
    %v157 = vld [vmem:[#allocation2 + $0x3a8] sm:$0xff]
    %v158 = vld [vmem:[#allocation2 + $0x3b0] sm:$0xff]
    %v159 = vld [vmem:[#allocation2 + $0x3b8] sm:$0xff]
    %v160 = vld [vmem:[#allocation2 + $0x3c0] sm:$0xff]
    %v161 = vld [vmem:[#allocation2 + $0x3c8] sm:$0xff]
    %v162 = vld [vmem:[#allocation2 + $0x3d0] sm:$0xff]
    %v163 = vld [vmem:[#allocation2 + $0x3d8] sm:$0xff]
    %v164 = vld [vmem:[#allocation2 + $0x3e0] sm:$0xff]
    %v165 = vld [vmem:[#allocation2 + $0x3e8] sm:$0xff]
    %v166 = vld [vmem:[#allocation2 + $0x3f0] sm:$0xff]
    %v167 = vld [vmem:[#allocation2 + $0x3f8] sm:$0xff]
    %v168 = vld [vmem:[#allocation2 + $0x400] sm:$0xff]
    %v169 = vld [vmem:[#allocation2 + $0x408] sm:$0xff]
    %v170 = vld [vmem:[#allocation2 + $0x410] sm:$0xff]
    %v171 = vld [vmem:[#allocation2 + $0x418] sm:$0xff]
    %v172 = vld [vmem:[#allocation2 + $0x420] sm:$0xff]
    %v173 = vld [vmem:[#allocation2 + $0x428] sm:$0xff]
    %v174 = vld [vmem:[#allocation2 + $0x430] sm:$0xff]
    %v175 = vld [vmem:[#allocation2 + $0x438] sm:$0xff]
    %v176 = vld [vmem:[#allocation2 + $0x440] sm:$0xff]
    %v177 = vld [vmem:[#allocation2 + $0x448] sm:$0xff]
    %v178 = vld [vmem:[#allocation2 + $0x450] sm:$0xff]
    %v179 = vld [vmem:[#allocation2 + $0x458] sm:$0xff]
    %v180 = vld [vmem:[#allocation2 + $0x460] sm:$0xff]
    %v181 = vld [vmem:[#allocation2 + $0x468] sm:$0xff]
    %v182 = vld [vmem:[#allocation2 + $0x470] sm:$0xff]
    %v183 = vld [vmem:[#allocation2 + $0x478] sm:$0xff]
    %v184 = vld [vmem:[#allocation2 + $0x480] sm:$0xff]
    %v185 = vld [vmem:[#allocation2 + $0x488] sm:$0xff]
    %v186 = vld [vmem:[#allocation2 + $0x490] sm:$0xff]
    %v187 = vld [vmem:[#allocation2 + $0x498] sm:$0xff]
    %v188 = vld [vmem:[#allocation2 + $0x4a0] sm:$0xff]
    %v189 = vld [vmem:[#allocation2 + $0x4a8] sm:$0xff]
    %v190 = vld [vmem:[#allocation2 + $0x4b0] sm:$0xff]
    %v191 = vld [vmem:[#allocation2 + $0x4b8] sm:$0xff]
    %v192 = vld [vmem:[#allocation2 + $0x4c0] sm:$0xff]
    %v193 = vld [vmem:[#allocation2 + $0x4c8] sm:$0xff]
    %v194 = vld [vmem:[#allocation2 + $0x4d0] sm:$0xff]
    %v195 = vld [vmem:[#allocation2 + $0x4d8] sm:$0xff]
    %v196 = vld [vmem:[#allocation2 + $0x4e0] sm:$0xff]
    %v197 = vld [vmem:[#allocation2 + $0x4e8] sm:$0xff]
    %v198 = vld [vmem:[#allocation2 + $0x4f0] sm:$0xff]
    %v199 = vld [vmem:[#allocation2 + $0x4f8] sm:$0xff]
    %v200 = vld [vmem:[#allocation2 + $0x500] sm:$0xff]
    %v201 = vld [vmem:[#allocation2 + $0x508] sm:$0xff]
    %v202 = vld [vmem:[#allocation2 + $0x510] sm:$0xff]
    %v203 = vld [vmem:[#allocation2 + $0x518] sm:$0xff]
    %v204 = vld [vmem:[#allocation2 + $0x520] sm:$0xff]
    %v205 = vld [vmem:[#allocation2 + $0x528] sm:$0xff]
    %v206 = vld [vmem:[#allocation2 + $0x530] sm:$0xff]
    %v207 = vld [vmem:[#allocation2 + $0x538] sm:$0xff]
    %v208 = vld [vmem:[#allocation2 + $0x540] sm:$0xff]
    %v209 = vld [vmem:[#allocation2 + $0x548] sm:$0xff]
    %v210 = vld [vmem:[#allocation2 + $0x550] sm:$0xff]
    %v211 = vld [vmem:[#allocation2 + $0x558] sm:$0xff]
    %v212 = vld [vmem:[#allocation2 + $0x560] sm:$0xff]
    %v213 = vld [vmem:[#allocation2 + $0x568] sm:$0xff]
    %v214 = vld [vmem:[#allocation2 + $0x570] sm:$0xff]
    %v215 = vld [vmem:[#allocation2 + $0x578] sm:$0xff]
    %v216 = vld [vmem:[#allocation2 + $0x580] sm:$0xff]
    %v217 = vld [vmem:[#allocation2 + $0x588] sm:$0xff]
    %v218 = vld [vmem:[#allocation2 + $0x590] sm:$0xff]
    %v219 = vld [vmem:[#allocation2 + $0x598] sm:$0xff]
    %v220 = vld [vmem:[#allocation2 + $0x5a0] sm:$0xff]
    %v221 = vld [vmem:[#allocation2 + $0x5a8] sm:$0xff]
    %v222 = vld [vmem:[#allocation2 + $0x5b0] sm:$0xff]
    %v223 = vld [vmem:[#allocation2 + $0x5b8] sm:$0xff]
    %v224 = vld [vmem:[#allocation2 + $0x5c0] sm:$0xff]
    %v225 = vld [vmem:[#allocation2 + $0x5c8] sm:$0xff]
    %v226 = vld [vmem:[#allocation2 + $0x5d0] sm:$0xff]
    %v227 = vld [vmem:[#allocation2 + $0x5d8] sm:$0xff]
    %v228 = vld [vmem:[#allocation2 + $0x5e0] sm:$0xff]
    %v229 = vld [vmem:[#allocation2 + $0x5e8] sm:$0xff]
    %v230 = vld [vmem:[#allocation2 + $0x5f0] sm:$0xff]
    %v231 = vld [vmem:[#allocation2 + $0x5f8] sm:$0xff]
    %v232 = vld [vmem:[#allocation2 + $0x600] sm:$0xff]
    %v233 = vld [vmem:[#allocation2 + $0x608] sm:$0xff]
    %v234 = vld [vmem:[#allocation2 + $0x610] sm:$0xff]
    %v235 = vld [vmem:[#allocation2 + $0x618] sm:$0xff]
    %v236 = vld [vmem:[#allocation2 + $0x620] sm:$0xff]
    %v237 = vld [vmem:[#allocation2 + $0x628] sm:$0xff]
    %v238 = vld [vmem:[#allocation2 + $0x630] sm:$0xff]
    %v239 = vld [vmem:[#allocation2 + $0x638] sm:$0xff]
    %v240 = vld [vmem:[#allocation2 + $0x640] sm:$0xff]
    %v241 = vld [vmem:[#allocation2 + $0x648] sm:$0xff]
    %v242 = vld [vmem:[#allocation2 + $0x650] sm:$0xff]
    %v243 = vld [vmem:[#allocation2 + $0x658] sm:$0xff]
    %v244 = vld [vmem:[#allocation2 + $0x660] sm:$0xff]
    %v245 = vld [vmem:[#allocation2 + $0x668] sm:$0xff]
    %v246 = vld [vmem:[#allocation2 + $0x670] sm:$0xff]
    %v247 = vld [vmem:[#allocation2 + $0x678] sm:$0xff]
    %v248 = vld [vmem:[#allocation2 + $0x680] sm:$0xff]
    %v249 = vld [vmem:[#allocation2 + $0x688] sm:$0xff]
    %v250 = vld [vmem:[#allocation2 + $0x690] sm:$0xff]
    %v251 = vld [vmem:[#allocation2 + $0x698] sm:$0xff]
    %v252 = vld [vmem:[#allocation2 + $0x6a0] sm:$0xff]
    %v253 = vld [vmem:[#allocation2 + $0x6a8] sm:$0xff]
    %v254 = vld [vmem:[#allocation2 + $0x6b0] sm:$0xff]
    %v255 = vld [vmem:[#allocation2 + $0x6b8] sm:$0xff]
    %v256 = vld [vmem:[#allocation2 + $0x6c0] sm:$0xff]
    %v257 = vld [vmem:[#allocation2 + $0x6c8] sm:$0xff]
    %v258 = vld [vmem:[#allocation2 + $0x6d0] sm:$0xff]
    %v259 = vld [vmem:[#allocation2 + $0x6d8] sm:$0xff]
    %v260 = vld [vmem:[#allocation2 + $0x6e0] sm:$0xff]
    %v261 = vld [vmem:[#allocation2 + $0x6e8] sm:$0xff]
    %v262 = vld [vmem:[#allocation2 + $0x6f0] sm:$0xff]
    %v263 = vld [vmem:[#allocation2 + $0x6f8] sm:$0xff]
    %v264 = vld [vmem:[#allocation2 + $0x700] sm:$0xff]
    %v265 = vld [vmem:[#allocation2 + $0x708] sm:$0xff]
    %v266 = vld [vmem:[#allocation2 + $0x710] sm:$0xff]
    %v267 = vld [vmem:[#allocation2 + $0x718] sm:$0xff]
    %v268 = vld [vmem:[#allocation2 + $0x720] sm:$0xff]
    %v269 = vld [vmem:[#allocation2 + $0x728] sm:$0xff]
    %v270 = vld [vmem:[#allocation2 + $0x730] sm:$0xff]
    %v271 = vld [vmem:[#allocation2 + $0x738] sm:$0xff]
    %v272 = vld [vmem:[#allocation2 + $0x740] sm:$0xff]
    %v273 = vld [vmem:[#allocation2 + $0x748] sm:$0xff]
    %v274 = vld [vmem:[#allocation2 + $0x750] sm:$0xff]
    %v275 = vld [vmem:[#allocation2 + $0x758] sm:$0xff]
    %v276 = vld [vmem:[#allocation2 + $0x760] sm:$0xff]
    %v277 = vld [vmem:[#allocation2 + $0x768] sm:$0xff]
    %v278 = vld [vmem:[#allocation2 + $0x770] sm:$0xff]
    %v279 = vld [vmem:[#allocation2 + $0x778] sm:$0xff]
    %v280 = vld [vmem:[#allocation2 + $0x780] sm:$0xff]
    %v281 = vld [vmem:[#allocation2 + $0x788] sm:$0xff]
    %v282 = vld [vmem:[#allocation2 + $0x790] sm:$0xff]
    %v283 = vld [vmem:[#allocation2 + $0x798] sm:$0xff]
    %v284 = vld [vmem:[#allocation2 + $0x7a0] sm:$0xff]
    %v285 = vld [vmem:[#allocation2 + $0x7a8] sm:$0xff]
    %v286 = vld [vmem:[#allocation2 + $0x7b0] sm:$0xff]
    %v287 = vld [vmem:[#allocation2 + $0x7b8] sm:$0xff]
    %v288 = vld [vmem:[#allocation2 + $0x7c0] sm:$0xff]
    %v289 = vld [vmem:[#allocation2 + $0x7c8] sm:$0xff]
    %v290 = vld [vmem:[#allocation2 + $0x7d0] sm:$0xff]
    %v291 = vld [vmem:[#allocation2 + $0x7d8] sm:$0xff]
    %v292 = vld [vmem:[#allocation5] sm:$0xff]
    %v293 = vld [vmem:[#allocation5 + $0x8] sm:$0xff]
    %v294 = vld [vmem:[#allocation5 + $0x10] sm:$0xff]
    %v295 = vld [vmem:[#allocation5 + $0x18] sm:$0xff]
    %v296 = vld [vmem:[#allocation5 + $0x20] sm:$0xff]
    %v297 = vld [vmem:[#allocation5 + $0x28] sm:$0xff]
    %v298 = vld [vmem:[#allocation5 + $0x30] sm:$0xff]
    %v299 = vld [vmem:[#allocation5 + $0x38] sm:$0xff]
    %v300 = vld [vmem:[#allocation5 + $0x40] sm:$0xff]
    %v301 = vld [vmem:[#allocation5 + $0x48] sm:$0xff]
    %v302 = vld [vmem:[#allocation5 + $0x50] sm:$0xff]
    %v303 = vld [vmem:[#allocation5 + $0x58] sm:$0xff]
    %v304 = vld [vmem:[#allocation5 + $0x60] sm:$0xff]
    %v305 = vld [vmem:[#allocation5 + $0x68] sm:$0xff]
    %v306 = vld [vmem:[#allocation5 + $0x70] sm:$0xff]
    %v307 = vld [vmem:[#allocation5 + $0x78] sm:$0xff]
    %v308 = vld [vmem:[#allocation5 + $0x80] sm:$0xff]
    %v309 = vld [vmem:[#allocation5 + $0x88] sm:$0xff]
    %v310 = vld [vmem:[#allocation5 + $0x90] sm:$0xff]
    %v311 = vld [vmem:[#allocation5 + $0x98] sm:$0xff]
    %v312 = vld [vmem:[#allocation5 + $0xa0] sm:$0xff]
    %v313 = vld [vmem:[#allocation5 + $0xa8] sm:$0xff]
    %v314 = vld [vmem:[#allocation5 + $0xb0] sm:$0xff]
    %v315 = vld [vmem:[#allocation5 + $0xb8] sm:$0xff]
    %v316 = vld [vmem:[#allocation5 + $0xc0] sm:$0xff]
    %v317 = vld [vmem:[#allocation5 + $0xc8] sm:$0xff]
    %v318 = vld [vmem:[#allocation5 + $0xd0] sm:$0xff]
    %v319 = vld [vmem:[#allocation5 + $0xd8] sm:$0xff]
    %v320 = vld [vmem:[#allocation5 + $0xe0] sm:$0xff]
    %v321 = vld [vmem:[#allocation5 + $0xe8] sm:$0xff]
    %v322 = vld [vmem:[#allocation5 + $0xf0] sm:$0xff]
    %v323 = vld [vmem:[#allocation5 + $0xf8] sm:$0xff]
    %v324 = vld [vmem:[#allocation5 + $0x100] sm:$0xff]
    %v325 = vld [vmem:[#allocation5 + $0x108] sm:$0xff]
    %v326 = vld [vmem:[#allocation5 + $0x110] sm:$0xff]
    %v327 = vld [vmem:[#allocation5 + $0x118] sm:$0xff]
    %v328 = vld [vmem:[#allocation5 + $0x120] sm:$0xff]
    %v329 = vld [vmem:[#allocation5 + $0x128] sm:$0xff]
    %v330 = vld [vmem:[#allocation5 + $0x130] sm:$0xff]
    %v331 = vld [vmem:[#allocation5 + $0x138] sm:$0xff]
    %v332 = vld [vmem:[#allocation5 + $0x140] sm:$0xff]
    %v333 = vld [vmem:[#allocation5 + $0x148] sm:$0xff]
    %v334 = vld [vmem:[#allocation5 + $0x150] sm:$0xff]
    %v335 = vld [vmem:[#allocation5 + $0x158] sm:$0xff]
    %v336 = vld [vmem:[#allocation5 + $0x160] sm:$0xff]
    %v337 = vld [vmem:[#allocation5 + $0x168] sm:$0xff]
    %v338 = vld [vmem:[#allocation5 + $0x170] sm:$0xff]
    %v339 = vld [vmem:[#allocation5 + $0x178] sm:$0xff]
    %v340 = vld [vmem:[#allocation5 + $0x180] sm:$0xff]
    %v341 = vld [vmem:[#allocation5 + $0x188] sm:$0xff]
    %v342 = vld [vmem:[#allocation5 + $0x190] sm:$0xff]
    %v343 = vld [vmem:[#allocation5 + $0x198] sm:$0xff]
    %v344 = vld [vmem:[#allocation5 + $0x1a0] sm:$0xff]
    %v345 = vld [vmem:[#allocation5 + $0x1a8] sm:$0xff]
    %v346 = vld [vmem:[#allocation5 + $0x1b0] sm:$0xff]
    %v347 = vld [vmem:[#allocation5 + $0x1b8] sm:$0xff]
    %v348 = vld [vmem:[#allocation5 + $0x1c0] sm:$0xff]
    %v349 = vld [vmem:[#allocation5 + $0x1c8] sm:$0xff]
    %v350 = vld [vmem:[#allocation5 + $0x1d0] sm:$0xff]
    %v351 = vld [vmem:[#allocation5 + $0x1d8] sm:$0xff]
    %v352 = vld [vmem:[#allocation5 + $0x1e0] sm:$0xff]
    %v353 = vld [vmem:[#allocation5 + $0x1e8] sm:$0xff]
    %v354 = vld [vmem:[#allocation5 + $0x1f0] sm:$0xff]
    %v355 = vld [vmem:[#allocation5 + $0x1f8] sm:$0xff]
    %v356 = vld [vmem:[#allocation5 + $0x200] sm:$0xff]
    %v357 = vld [vmem:[#allocation5 + $0x208] sm:$0xff]
    %v358 = vld [vmem:[#allocation5 + $0x210] sm:$0xff]
    %v359 = vld [vmem:[#allocation5 + $0x218] sm:$0xff]
    %v360 = vld [vmem:[#allocation5 + $0x220] sm:$0xff]
    %v361 = vld [vmem:[#allocation5 + $0x228] sm:$0xff]
    %v362 = vld [vmem:[#allocation5 + $0x230] sm:$0xff]
    %v363 = vld [vmem:[#allocation5 + $0x238] sm:$0xff]
    %v364 = vld [vmem:[#allocation5 + $0x240] sm:$0xff]
    %v365 = vld [vmem:[#allocation5 + $0x248] sm:$0xff]
    %v366 = vld [vmem:[#allocation5 + $0x250] sm:$0xff]
    %v367 = vld [vmem:[#allocation5 + $0x258] sm:$0xff]
    %v368 = vld [vmem:[#allocation5 + $0x260] sm:$0xff]
    %v369 = vld [vmem:[#allocation5 + $0x268] sm:$0xff]
    %v370 = vld [vmem:[#allocation5 + $0x270] sm:$0xff]
    %v371 = vld [vmem:[#allocation5 + $0x278] sm:$0xff]
    %v372 = vld [vmem:[#allocation5 + $0x280] sm:$0xff]
    %v373 = vld [vmem:[#allocation5 + $0x288] sm:$0xff]
    %v374 = vld [vmem:[#allocation5 + $0x290] sm:$0xff]
    %v375 = vld [vmem:[#allocation5 + $0x298] sm:$0xff]
    %v376 = vld [vmem:[#allocation5 + $0x2a0] sm:$0xff]
    %v377 = vld [vmem:[#allocation5 + $0x2a8] sm:$0xff]
    %v378 = vld [vmem:[#allocation5 + $0x2b0] sm:$0xff]
    %v379 = vld [vmem:[#allocation5 + $0x2b8] sm:$0xff]
    %v380 = vld [vmem:[#allocation5 + $0x2c0] sm:$0xff]
    %v381 = vld [vmem:[#allocation5 + $0x2c8] sm:$0xff]
    %v382 = vld [vmem:[#allocation5 + $0x2d0] sm:$0xff]
    %v383 = vld [vmem:[#allocation5 + $0x2d8] sm:$0xff]
    %v384 = vld [vmem:[#allocation5 + $0x2e0] sm:$0xff]
    %v385 = vld [vmem:[#allocation5 + $0x2e8] sm:$0xff]
    %v386 = vld [vmem:[#allocation5 + $0x2f0] sm:$0xff]
    %v387 = vld [vmem:[#allocation5 + $0x2f8] sm:$0xff]
    %v388 = vld [vmem:[#allocation5 + $0x300] sm:$0xff]
    %v389 = vld [vmem:[#allocation5 + $0x308] sm:$0xff]
    %v390 = vld [vmem:[#allocation5 + $0x310] sm:$0xff]
    %v391 = vld [vmem:[#allocation5 + $0x318] sm:$0xff]
    %v392 = vld [vmem:[#allocation5 + $0x320] sm:$0xff]
    %v393 = vld [vmem:[#allocation5 + $0x328] sm:$0xff]
    %v394 = vld [vmem:[#allocation5 + $0x330] sm:$0xff]
    %v395 = vld [vmem:[#allocation5 + $0x338] sm:$0xff]
    %v396 = vld [vmem:[#allocation5 + $0x340] sm:$0xff]
    %v397 = vld [vmem:[#allocation5 + $0x348] sm:$0xff]
    %v398 = vld [vmem:[#allocation5 + $0x350] sm:$0xff]
    %v399 = vld [vmem:[#allocation5 + $0x358] sm:$0xff]
    %v400 = vld [vmem:[#allocation5 + $0x360] sm:$0xff]
    %v401 = vld [vmem:[#allocation5 + $0x368] sm:$0xff]
    %v402 = vld [vmem:[#allocation5 + $0x370] sm:$0xff]
    %v403 = vld [vmem:[#allocation5 + $0x378] sm:$0xff]
    %v404 = vld [vmem:[#allocation5 + $0x380] sm:$0xff]
    %v405 = vld [vmem:[#allocation5 + $0x388] sm:$0xff]
    %v406 = vld [vmem:[#allocation5 + $0x390] sm:$0xff]
    %v407 = vld [vmem:[#allocation5 + $0x398] sm:$0xff]
    %v408 = vld [vmem:[#allocation5 + $0x3a0] sm:$0xff]
    %v409 = vld [vmem:[#allocation5 + $0x3a8] sm:$0xff]
    %v410 = vld [vmem:[#allocation5 + $0x3b0] sm:$0xff]
    %v411 = vld [vmem:[#allocation5 + $0x3b8] sm:$0xff]
    %v412 = vld [vmem:[#allocation5 + $0x3c0] sm:$0xff]
    %v413 = vld [vmem:[#allocation5 + $0x3c8] sm:$0xff]
    %v414 = vld [vmem:[#allocation5 + $0x3d0] sm:$0xff]
    %v415 = vld [vmem:[#allocation5 + $0x3d8] sm:$0xff]
    %v416 = vld [vmem:[#allocation5 + $0x3e0] sm:$0xff]
    %v417 = vld [vmem:[#allocation5 + $0x3e8] sm:$0xff]
    %v418 = vld [vmem:[#allocation5 + $0x3f0] sm:$0xff]
    %v419 = vld [vmem:[#allocation5 + $0x3f8] sm:$0xff]
    %v420 = vld [vmem:[#allocation5 + $0x400] sm:$0xff]
    %v421 = vld [vmem:[#allocation5 + $0x408] sm:$0xff]
    %v422 = vld [vmem:[#allocation5 + $0x410] sm:$0xff]
    %v423 = vld [vmem:[#allocation5 + $0x418] sm:$0xff]
    %v424 = vld [vmem:[#allocation5 + $0x420] sm:$0xff]
    %v425 = vld [vmem:[#allocation5 + $0x428] sm:$0xff]
    %v426 = vld [vmem:[#allocation5 + $0x430] sm:$0xff]
    %v427 = vld [vmem:[#allocation5 + $0x438] sm:$0xff]
    %v428 = vld [vmem:[#allocation5 + $0x440] sm:$0xff]
    %v429 = vld [vmem:[#allocation5 + $0x448] sm:$0xff]
    %v430 = vld [vmem:[#allocation5 + $0x450] sm:$0xff]
    %v431 = vld [vmem:[#allocation5 + $0x458] sm:$0xff]
    %v432 = vld [vmem:[#allocation5 + $0x460] sm:$0xff]
    %v433 = vld [vmem:[#allocation5 + $0x468] sm:$0xff]
    %v434 = vld [vmem:[#allocation5 + $0x470] sm:$0xff]
    %v435 = vld [vmem:[#allocation5 + $0x478] sm:$0xff]
    %v436 = vld [vmem:[#allocation5 + $0x480] sm:$0xff]
    %v437 = vld [vmem:[#allocation5 + $0x488] sm:$0xff]
    %v438 = vld [vmem:[#allocation5 + $0x490] sm:$0xff]
    %v439 = vld [vmem:[#allocation5 + $0x498] sm:$0xff]
    %v440 = vld [vmem:[#allocation5 + $0x4a0] sm:$0xff]
    %v441 = vld [vmem:[#allocation5 + $0x4a8] sm:$0xff]
    %v442 = vld [vmem:[#allocation5 + $0x4b0] sm:$0xff]
    %v443 = vld [vmem:[#allocation5 + $0x4b8] sm:$0xff]
    %v444 = vld [vmem:[#allocation5 + $0x4c0] sm:$0xff]
    %v445 = vld [vmem:[#allocation5 + $0x4c8] sm:$0xff]
    %v446 = vld [vmem:[#allocation5 + $0x4d0] sm:$0xff]
    %v447 = vld [vmem:[#allocation5 + $0x4d8] sm:$0xff]
    %v448 = vld [vmem:[#allocation5 + $0x4e0] sm:$0xff]
    %v449 = vld [vmem:[#allocation5 + $0x4e8] sm:$0xff]
    %v450 = vld [vmem:[#allocation5 + $0x4f0] sm:$0xff]
    %v451 = vld [vmem:[#allocation5 + $0x4f8] sm:$0xff]
    %v452 = vld [vmem:[#allocation5 + $0x500] sm:$0xff]
    %v453 = vld [vmem:[#allocation5 + $0x508] sm:$0xff]
    %v454 = vld [vmem:[#allocation5 + $0x510] sm:$0xff]
    %v455 = vld [vmem:[#allocation5 + $0x518] sm:$0xff]
    %v456 = vld [vmem:[#allocation5 + $0x520] sm:$0xff]
    %v457 = vld [vmem:[#allocation5 + $0x528] sm:$0xff]
    %v458 = vld [vmem:[#allocation5 + $0x530] sm:$0xff]
    %v459 = vld [vmem:[#allocation5 + $0x538] sm:$0xff]
    %v460 = vld [vmem:[#allocation5 + $0x540] sm:$0xff]
    %v461 = vld [vmem:[#allocation5 + $0x548] sm:$0xff]
    %v462 = vld [vmem:[#allocation5 + $0x550] sm:$0xff]
    %v463 = vld [vmem:[#allocation5 + $0x558] sm:$0xff]
    %v464 = vld [vmem:[#allocation5 + $0x560] sm:$0xff]
    %v465 = vld [vmem:[#allocation5 + $0x568] sm:$0xff]
    %v466 = vld [vmem:[#allocation5 + $0x570] sm:$0xff]
    %v467 = vld [vmem:[#allocation5 + $0x578] sm:$0xff]
    %v468 = vld [vmem:[#allocation5 + $0x580] sm:$0xff]
    %v469 = vld [vmem:[#allocation5 + $0x588] sm:$0xff]
    %v470 = vld [vmem:[#allocation5 + $0x590] sm:$0xff]
    %v471 = vld [vmem:[#allocation5 + $0x598] sm:$0xff]
    %v472 = vld [vmem:[#allocation5 + $0x5a0] sm:$0xff]
    %v473 = vld [vmem:[#allocation5 + $0x5a8] sm:$0xff]
    %v474 = vld [vmem:[#allocation5 + $0x5b0] sm:$0xff]
    %v475 = vld [vmem:[#allocation5 + $0x5b8] sm:$0xff]
    %v476 = vld [vmem:[#allocation5 + $0x5c0] sm:$0xff]
    %v477 = vld [vmem:[#allocation5 + $0x5c8] sm:$0xff]
    %v478 = vld [vmem:[#allocation5 + $0x5d0] sm:$0xff]
    %v479 = vld [vmem:[#allocation5 + $0x5d8] sm:$0xff]
    %v480 = vld [vmem:[#allocation5 + $0x5e0] sm:$0xff]
    %v481 = vld [vmem:[#allocation5 + $0x5e8] sm:$0xff]
    %v482 = vld [vmem:[#allocation5 + $0x5f0] sm:$0xff]
    %v483 = vld [vmem:[#allocation5 + $0x5f8] sm:$0xff]
    %v484 = vld [vmem:[#allocation5 + $0x600] sm:$0xff]
    %v485 = vld [vmem:[#allocation5 + $0x608] sm:$0xff]
    %v486 = vld [vmem:[#allocation5 + $0x610] sm:$0xff]
    %v487 = vld [vmem:[#allocation5 + $0x618] sm:$0xff]
    %v488 = vld [vmem:[#allocation5 + $0x620] sm:$0xff]
    %v489 = vld [vmem:[#allocation5 + $0x628] sm:$0xff]
    %v490 = vld [vmem:[#allocation5 + $0x630] sm:$0xff]
    %v491 = vld [vmem:[#allocation5 + $0x638] sm:$0xff]
    %v492 = vld [vmem:[#allocation5 + $0x640] sm:$0xff]
    %v493 = vld [vmem:[#allocation5 + $0x648] sm:$0xff]
    %v494 = vld [vmem:[#allocation5 + $0x650] sm:$0xff]
    %v495 = vld [vmem:[#allocation5 + $0x658] sm:$0xff]
    %v496 = vld [vmem:[#allocation5 + $0x660] sm:$0xff]
    %v497 = vld [vmem:[#allocation5 + $0x668] sm:$0xff]
    %v498 = vld [vmem:[#allocation5 + $0x670] sm:$0xff]
    %v499 = vld [vmem:[#allocation5 + $0x678] sm:$0xff]
    %v500 = vld [vmem:[#allocation5 + $0x680] sm:$0xff]
    %v501 = vld [vmem:[#allocation5 + $0x688] sm:$0xff]
    %v502 = vld [vmem:[#allocation5 + $0x690] sm:$0xff]
    %v503 = vld [vmem:[#allocation5 + $0x698] sm:$0xff]
    %v504 = vld [vmem:[#allocation5 + $0x6a0] sm:$0xff]
    %v505 = vld [vmem:[#allocation5 + $0x6a8] sm:$0xff]
    %v506 = vld [vmem:[#allocation5 + $0x6b0] sm:$0xff]
    %v507 = vld [vmem:[#allocation5 + $0x6b8] sm:$0xff]
    %v508 = vld [vmem:[#allocation5 + $0x6c0] sm:$0xff]
    %v509 = vld [vmem:[#allocation5 + $0x6c8] sm:$0xff]
    %v510 = vld [vmem:[#allocation5 + $0x6d0] sm:$0xff]
    %v511 = vld [vmem:[#allocation5 + $0x6d8] sm:$0xff]
    %v512 = vld [vmem:[#allocation5 + $0x6e0] sm:$0xff]
    %v513 = vld [vmem:[#allocation5 + $0x6e8] sm:$0xff]
    %v514 = vld [vmem:[#allocation5 + $0x6f0] sm:$0xff]
    %v515 = vld [vmem:[#allocation5 + $0x6f8] sm:$0xff]
    %v516 = vld [vmem:[#allocation5 + $0x700] sm:$0xff]
    %v517 = vld [vmem:[#allocation5 + $0x708] sm:$0xff]
    %v518 = vld [vmem:[#allocation5 + $0x710] sm:$0xff]
    %v519 = vld [vmem:[#allocation5 + $0x718] sm:$0xff]
    %v520 = vld [vmem:[#allocation5 + $0x720] sm:$0xff]
    %v521 = vld [vmem:[#allocation5 + $0x728] sm:$0xff]
    %v522 = vld [vmem:[#allocation5 + $0x730] sm:$0xff]
    %v523 = vld [vmem:[#allocation5 + $0x738] sm:$0xff]
    %v524 = vld [vmem:[#allocation5 + $0x740] sm:$0xff]
    %v525 = vld [vmem:[#allocation5 + $0x748] sm:$0xff]
    %v526 = vld [vmem:[#allocation5 + $0x750] sm:$0xff]
    %v527 = vld [vmem:[#allocation5 + $0x758] sm:$0xff]
    %v528 = vld [vmem:[#allocation5 + $0x760] sm:$0xff]
    %v529 = vld [vmem:[#allocation5 + $0x768] sm:$0xff]
    %v530 = vld [vmem:[#allocation5 + $0x770] sm:$0xff]
    %v531 = vld [vmem:[#allocation5 + $0x778] sm:$0xff]
    %v532 = vld [vmem:[#allocation5 + $0x780] sm:$0xff]
    %v533 = vld [vmem:[#allocation5 + $0x788] sm:$0xff]
    %v534 = vld [vmem:[#allocation5 + $0x790] sm:$0xff]
    %v535 = vld [vmem:[#allocation5 + $0x798] sm:$0xff]
    %v536 = vld [vmem:[#allocation5 + $0x7a0] sm:$0xff]
    %v537 = vld [vmem:[#allocation5 + $0x7a8] sm:$0xff]
    %v538 = vld [vmem:[#allocation5 + $0x7b0] sm:$0xff]
    %v539 = vld [vmem:[#allocation5 + $0x7b8] sm:$0xff]
    %v540 = vld [vmem:[#allocation5 + $0x7c0] sm:$0xff]
    %v541 = vld [vmem:[#allocation5 + $0x7c8] sm:$0xff]
    %v542 = vld [vmem:[#allocation5 + $0x7d0] sm:$0xff]
    %v543 = vld [vmem:[#allocation5 + $0x7d8] sm:$0xff]
    %v544 = vmax.f32 %v40, %v292
    %v545 = vmax.f32 %v41, %v293
    %v546 = vmax.f32 %v42, %v294
    %v547 = vmax.f32 %v43, %v295
    %v548 = vmax.f32 %v44, %v296
    %v549 = vmax.f32 %v45, %v297
    %v550 = vmax.f32 %v46, %v298
    %v551 = vmax.f32 %v47, %v299
    %v552 = vmax.f32 %v48, %v300
    %v553 = vmax.f32 %v49, %v301
    %v554 = vmax.f32 %v50, %v302
    %v555 = vmax.f32 %v51, %v303
    %v556 = vmax.f32 %v52, %v304
    %v557 = vmax.f32 %v53, %v305
    %v558 = vmax.f32 %v54, %v306
    %v559 = vmax.f32 %v55, %v307
    %v560 = vmax.f32 %v56, %v308
    %v561 = vmax.f32 %v57, %v309
    %v562 = vmax.f32 %v58, %v310
    %v563 = vmax.f32 %v59, %v311
    %v564 = vmax.f32 %v60, %v312
    %v565 = vmax.f32 %v61, %v313
    %v566 = vmax.f32 %v62, %v314
    %v567 = vmax.f32 %v63, %v315
    %v568 = vmax.f32 %v64, %v316
    %v569 = vmax.f32 %v65, %v317
    %v570 = vmax.f32 %v66, %v318
    %v571 = vmax.f32 %v67, %v319
    %v572 = vmax.f32 %v68, %v320
    %v573 = vmax.f32 %v69, %v321
    %v574 = vmax.f32 %v70, %v322
    %v575 = vmax.f32 %v71, %v323
    %v576 = vmax.f32 %v72, %v324
    %v577 = vmax.f32 %v73, %v325
    %v578 = vmax.f32 %v74, %v326
    %v579 = vmax.f32 %v75, %v327
    %v580 = vmax.f32 %v76, %v328
    %v581 = vmax.f32 %v77, %v329
    %v582 = vmax.f32 %v78, %v330
    %v583 = vmax.f32 %v79, %v331
    %v584 = vmax.f32 %v80, %v332
    %v585 = vmax.f32 %v81, %v333
    %v586 = vmax.f32 %v82, %v334
    %v587 = vmax.f32 %v83, %v335
    %v588 = vmax.f32 %v84, %v336
    %v589 = vmax.f32 %v85, %v337
    %v590 = vmax.f32 %v86, %v338
    %v591 = vmax.f32 %v87, %v339
    %v592 = vmax.f32 %v88, %v340
    %v593 = vmax.f32 %v89, %v341
    %v594 = vmax.f32 %v90, %v342
    %v595 = vmax.f32 %v91, %v343
    %v596 = vmax.f32 %v92, %v344
    %v597 = vmax.f32 %v93, %v345
    %v598 = vmax.f32 %v94, %v346
    %v599 = vmax.f32 %v95, %v347
    %v600 = vmax.f32 %v96, %v348
    %v601 = vmax.f32 %v97, %v349
    %v602 = vmax.f32 %v98, %v350
    %v603 = vmax.f32 %v99, %v351
    %v604 = vmax.f32 %v100, %v352
    %v605 = vmax.f32 %v101, %v353
    %v606 = vmax.f32 %v102, %v354
    %v607 = vmax.f32 %v103, %v355
    %v608 = vmax.f32 %v104, %v356
    %v609 = vmax.f32 %v105, %v357
    %v610 = vmax.f32 %v106, %v358
    %v611 = vmax.f32 %v107, %v359
    %v612 = vmax.f32 %v108, %v360
    %v613 = vmax.f32 %v109, %v361
    %v614 = vmax.f32 %v110, %v362
    %v615 = vmax.f32 %v111, %v363
    %v616 = vmax.f32 %v112, %v364
    %v617 = vmax.f32 %v113, %v365
    %v618 = vmax.f32 %v114, %v366
    %v619 = vmax.f32 %v115, %v367
    %v620 = vmax.f32 %v116, %v368
    %v621 = vmax.f32 %v117, %v369
    %v622 = vmax.f32 %v118, %v370
    %v623 = vmax.f32 %v119, %v371
    %v624 = vmax.f32 %v120, %v372
    %v625 = vmax.f32 %v121, %v373
    %v626 = vmax.f32 %v122, %v374
    %v627 = vmax.f32 %v123, %v375
    %v628 = vmax.f32 %v124, %v376
    %v629 = vmax.f32 %v125, %v377
    %v630 = vmax.f32 %v126, %v378
    %v631 = vmax.f32 %v127, %v379
    %v632 = vmax.f32 %v128, %v380
    %v633 = vmax.f32 %v129, %v381
    %v634 = vmax.f32 %v130, %v382
    %v635 = vmax.f32 %v131, %v383
    %v636 = vmax.f32 %v132, %v384
    %v637 = vmax.f32 %v133, %v385
    %v638 = vmax.f32 %v134, %v386
    %v639 = vmax.f32 %v135, %v387
    %v640 = vmax.f32 %v136, %v388
    %v641 = vmax.f32 %v137, %v389
    %v642 = vmax.f32 %v138, %v390
    %v643 = vmax.f32 %v139, %v391
    %v644 = vmax.f32 %v140, %v392
    %v645 = vmax.f32 %v141, %v393
    %v646 = vmax.f32 %v142, %v394
    %v647 = vmax.f32 %v143, %v395
    %v648 = vmax.f32 %v144, %v396
    %v649 = vmax.f32 %v145, %v397
    %v650 = vmax.f32 %v146, %v398
    %v651 = vmax.f32 %v147, %v399
    %v652 = vmax.f32 %v148, %v400
    %v653 = vmax.f32 %v149, %v401
    %v654 = vmax.f32 %v150, %v402
    %v655 = vmax.f32 %v151, %v403
    %v656 = vmax.f32 %v152, %v404
    %v657 = vmax.f32 %v153, %v405
    %v658 = vmax.f32 %v154, %v406
    %v659 = vmax.f32 %v155, %v407
    %v660 = vmax.f32 %v156, %v408
    %v661 = vmax.f32 %v157, %v409
    %v662 = vmax.f32 %v158, %v410
    %v663 = vmax.f32 %v159, %v411
    %v664 = vmax.f32 %v160, %v412
    %v665 = vmax.f32 %v161, %v413
    %v666 = vmax.f32 %v162, %v414
    %v667 = vmax.f32 %v163, %v415
    %v668 = vmax.f32 %v164, %v416
    %v669 = vmax.f32 %v165, %v417
    %v670 = vmax.f32 %v166, %v418
    %v671 = vmax.f32 %v167, %v419
    %v672 = vmax.f32 %v168, %v420
    %v673 = vmax.f32 %v169, %v421
    %v674 = vmax.f32 %v170, %v422
    %v675 = vmax.f32 %v171, %v423
    %v676 = vmax.f32 %v172, %v424
    %v677 = vmax.f32 %v173, %v425
    %v678 = vmax.f32 %v174, %v426
    %v679 = vmax.f32 %v175, %v427
    %v680 = vmax.f32 %v176, %v428
    %v681 = vmax.f32 %v177, %v429
    %v682 = vmax.f32 %v178, %v430
    %v683 = vmax.f32 %v179, %v431
    %v684 = vmax.f32 %v180, %v432
    %v685 = vmax.f32 %v181, %v433
    %v686 = vmax.f32 %v182, %v434
    %v687 = vmax.f32 %v183, %v435
    %v688 = vmax.f32 %v184, %v436
    %v689 = vmax.f32 %v185, %v437
    %v690 = vmax.f32 %v186, %v438
    %v691 = vmax.f32 %v187, %v439
    %v692 = vmax.f32 %v188, %v440
    %v693 = vmax.f32 %v189, %v441
    %v694 = vmax.f32 %v190, %v442
    %v695 = vmax.f32 %v191, %v443
    %v696 = vmax.f32 %v192, %v444
    %v697 = vmax.f32 %v193, %v445
    %v698 = vmax.f32 %v194, %v446
    %v699 = vmax.f32 %v195, %v447
    %v700 = vmax.f32 %v196, %v448
    %v701 = vmax.f32 %v197, %v449
    %v702 = vmax.f32 %v198, %v450
    %v703 = vmax.f32 %v199, %v451
    %v704 = vmax.f32 %v200, %v452
    %v705 = vmax.f32 %v201, %v453
    %v706 = vmax.f32 %v202, %v454
    %v707 = vmax.f32 %v203, %v455
    %v708 = vmax.f32 %v204, %v456
    %v709 = vmax.f32 %v205, %v457
    %v710 = vmax.f32 %v206, %v458
    %v711 = vmax.f32 %v207, %v459
    %v712 = vmax.f32 %v208, %v460
    %v713 = vmax.f32 %v209, %v461
    %v714 = vmax.f32 %v210, %v462
    %v715 = vmax.f32 %v211, %v463
    %v716 = vmax.f32 %v212, %v464
    %v717 = vmax.f32 %v213, %v465
    %v718 = vmax.f32 %v214, %v466
    %v719 = vmax.f32 %v215, %v467
    %v720 = vmax.f32 %v216, %v468
    %v721 = vmax.f32 %v217, %v469
    %v722 = vmax.f32 %v218, %v470
    %v723 = vmax.f32 %v219, %v471
    %v724 = vmax.f32 %v220, %v472
    %v725 = vmax.f32 %v221, %v473
    %v726 = vmax.f32 %v222, %v474
    %v727 = vmax.f32 %v223, %v475
    %v728 = vmax.f32 %v224, %v476
    %v729 = vmax.f32 %v225, %v477
    %v730 = vmax.f32 %v226, %v478
    %v731 = vmax.f32 %v227, %v479
    %v732 = vmax.f32 %v228, %v480
    %v733 = vmax.f32 %v229, %v481
    %v734 = vmax.f32 %v230, %v482
    %v735 = vmax.f32 %v231, %v483
    %v736 = vmax.f32 %v232, %v484
    %v737 = vmax.f32 %v233, %v485
    %v738 = vmax.f32 %v234, %v486
    %v739 = vmax.f32 %v235, %v487
    %v740 = vmax.f32 %v236, %v488
    %v741 = vmax.f32 %v237, %v489
    %v742 = vmax.f32 %v238, %v490
    %v743 = vmax.f32 %v239, %v491
    %v744 = vmax.f32 %v240, %v492
    %v745 = vmax.f32 %v241, %v493
    %v746 = vmax.f32 %v242, %v494
    %v747 = vmax.f32 %v243, %v495
    %v748 = vmax.f32 %v244, %v496
    %v749 = vmax.f32 %v245, %v497
    %v750 = vmax.f32 %v246, %v498
    %v751 = vmax.f32 %v247, %v499
    %v752 = vmax.f32 %v248, %v500
    %v753 = vmax.f32 %v249, %v501
    %v754 = vmax.f32 %v250, %v502
    %v755 = vmax.f32 %v251, %v503
    %v756 = vmax.f32 %v252, %v504
    %v757 = vmax.f32 %v253, %v505
    %v758 = vmax.f32 %v254, %v506
    %v759 = vmax.f32 %v255, %v507
    %v760 = vmax.f32 %v256, %v508
    %v761 = vmax.f32 %v257, %v509
    %v762 = vmax.f32 %v258, %v510
    %v763 = vmax.f32 %v259, %v511
    %v764 = vmax.f32 %v260, %v512
    %v765 = vmax.f32 %v261, %v513
    %v766 = vmax.f32 %v262, %v514
    %v767 = vmax.f32 %v263, %v515
    %v768 = vmax.f32 %v264, %v516
    %v769 = vmax.f32 %v265, %v517
    %v770 = vmax.f32 %v266, %v518
    %v771 = vmax.f32 %v267, %v519
    %v772 = vmax.f32 %v268, %v520
    %v773 = vmax.f32 %v269, %v521
    %v774 = vmax.f32 %v270, %v522
    %v775 = vmax.f32 %v271, %v523
    %v776 = vmax.f32 %v272, %v524
    %v777 = vmax.f32 %v273, %v525
    %v778 = vmax.f32 %v274, %v526
    %v779 = vmax.f32 %v275, %v527
    %v780 = vmax.f32 %v276, %v528
    %v781 = vmax.f32 %v277, %v529
    %v782 = vmax.f32 %v278, %v530
    %v783 = vmax.f32 %v279, %v531
    %v784 = vmax.f32 %v280, %v532
    %v785 = vmax.f32 %v281, %v533
    %v786 = vmax.f32 %v282, %v534
    %v787 = vmax.f32 %v283, %v535
    %v788 = vmax.f32 %v284, %v536
    %v789 = vmax.f32 %v285, %v537
    %v790 = vmax.f32 %v286, %v538
    %v791 = vmax.f32 %v287, %v539
    %v792 = vmax.f32 %v288, %v540
    %v793 = vmax.f32 %v289, %v541
    %v794 = vmax.f32 %v290, %v542
    %v795 = vmax.f32 %v291, %v543
    %796 = vst [vmem:[#allocation7] sm:$0xff] %v544
    %797 = vst [vmem:[#allocation7 + $0x8] sm:$0xff] %v545
    %798 = vst [vmem:[#allocation7 + $0x10] sm:$0xff] %v546
    %799 = vst [vmem:[#allocation7 + $0x18] sm:$0xff] %v547
    %800 = vst [vmem:[#allocation7 + $0x20] sm:$0xff] %v548
    %801 = vst [vmem:[#allocation7 + $0x28] sm:$0xff] %v549
    %802 = vst [vmem:[#allocation7 + $0x30] sm:$0xff] %v550
    %803 = vst [vmem:[#allocation7 + $0x38] sm:$0xff] %v551
    %804 = vst [vmem:[#allocation7 + $0x40] sm:$0xff] %v552
    %805 = vst [vmem:[#allocation7 + $0x48] sm:$0xff] %v553
    %806 = vst [vmem:[#allocation7 + $0x50] sm:$0xff] %v554
    %807 = vst [vmem:[#allocation7 + $0x58] sm:$0xff] %v555
    %808 = vst [vmem:[#allocation7 + $0x60] sm:$0xff] %v556
    %809 = vst [vmem:[#allocation7 + $0x68] sm:$0xff] %v557
    %810 = vst [vmem:[#allocation7 + $0x70] sm:$0xff] %v558
    %811 = vst [vmem:[#allocation7 + $0x78] sm:$0xff] %v559
    %812 = vst [vmem:[#allocation7 + $0x80] sm:$0xff] %v560
    %813 = vst [vmem:[#allocation7 + $0x88] sm:$0xff] %v561
    %814 = vst [vmem:[#allocation7 + $0x90] sm:$0xff] %v562
    %815 = vst [vmem:[#allocation7 + $0x98] sm:$0xff] %v563
    %816 = vst [vmem:[#allocation7 + $0xa0] sm:$0xff] %v564
    %817 = vst [vmem:[#allocation7 + $0xa8] sm:$0xff] %v565
    %818 = vst [vmem:[#allocation7 + $0xb0] sm:$0xff] %v566
    %819 = vst [vmem:[#allocation7 + $0xb8] sm:$0xff] %v567
    %820 = vst [vmem:[#allocation7 + $0xc0] sm:$0xff] %v568
    %821 = vst [vmem:[#allocation7 + $0xc8] sm:$0xff] %v569
    %822 = vst [vmem:[#allocation7 + $0xd0] sm:$0xff] %v570
    %823 = vst [vmem:[#allocation7 + $0xd8] sm:$0xff] %v571
    %824 = vst [vmem:[#allocation7 + $0xe0] sm:$0xff] %v572
    %825 = vst [vmem:[#allocation7 + $0xe8] sm:$0xff] %v573
    %826 = vst [vmem:[#allocation7 + $0xf0] sm:$0xff] %v574
    %827 = vst [vmem:[#allocation7 + $0xf8] sm:$0xff] %v575
    %828 = vst [vmem:[#allocation7 + $0x100] sm:$0xff] %v576
    %829 = vst [vmem:[#allocation7 + $0x108] sm:$0xff] %v577
    %830 = vst [vmem:[#allocation7 + $0x110] sm:$0xff] %v578
    %831 = vst [vmem:[#allocation7 + $0x118] sm:$0xff] %v579
    %832 = vst [vmem:[#allocation7 + $0x120] sm:$0xff] %v580
    %833 = vst [vmem:[#allocation7 + $0x128] sm:$0xff] %v581
    %834 = vst [vmem:[#allocation7 + $0x130] sm:$0xff] %v582
    %835 = vst [vmem:[#allocation7 + $0x138] sm:$0xff] %v583
    %836 = vst [vmem:[#allocation7 + $0x140] sm:$0xff] %v584
    %837 = vst [vmem:[#allocation7 + $0x148] sm:$0xff] %v585
    %838 = vst [vmem:[#allocation7 + $0x150] sm:$0xff] %v586
    %839 = vst [vmem:[#allocation7 + $0x158] sm:$0xff] %v587
    %840 = vst [vmem:[#allocation7 + $0x160] sm:$0xff] %v588
    %841 = vst [vmem:[#allocation7 + $0x168] sm:$0xff] %v589
    %842 = vst [vmem:[#allocation7 + $0x170] sm:$0xff] %v590
    %843 = vst [vmem:[#allocation7 + $0x178] sm:$0xff] %v591
    %844 = vst [vmem:[#allocation7 + $0x180] sm:$0xff] %v592
    %845 = vst [vmem:[#allocation7 + $0x188] sm:$0xff] %v593
    %846 = vst [vmem:[#allocation7 + $0x190] sm:$0xff] %v594
    %847 = vst [vmem:[#allocation7 + $0x198] sm:$0xff] %v595
    %848 = vst [vmem:[#allocation7 + $0x1a0] sm:$0xff] %v596
    %849 = vst [vmem:[#allocation7 + $0x1a8] sm:$0xff] %v597
    %850 = vst [vmem:[#allocation7 + $0x1b0] sm:$0xff] %v598
    %851 = vst [vmem:[#allocation7 + $0x1b8] sm:$0xff] %v599
    %852 = vst [vmem:[#allocation7 + $0x1c0] sm:$0xff] %v600
    %853 = vst [vmem:[#allocation7 + $0x1c8] sm:$0xff] %v601
    %854 = vst [vmem:[#allocation7 + $0x1d0] sm:$0xff] %v602
    %855 = vst [vmem:[#allocation7 + $0x1d8] sm:$0xff] %v603
    %856 = vst [vmem:[#allocation7 + $0x1e0] sm:$0xff] %v604
    %857 = vst [vmem:[#allocation7 + $0x1e8] sm:$0xff] %v605
    %858 = vst [vmem:[#allocation7 + $0x1f0] sm:$0xff] %v606
    %859 = vst [vmem:[#allocation7 + $0x1f8] sm:$0xff] %v607
    %860 = vst [vmem:[#allocation7 + $0x200] sm:$0xff] %v608
    %861 = vst [vmem:[#allocation7 + $0x208] sm:$0xff] %v609
    %862 = vst [vmem:[#allocation7 + $0x210] sm:$0xff] %v610
    %863 = vst [vmem:[#allocation7 + $0x218] sm:$0xff] %v611
    %864 = vst [vmem:[#allocation7 + $0x220] sm:$0xff] %v612
    %865 = vst [vmem:[#allocation7 + $0x228] sm:$0xff] %v613
    %866 = vst [vmem:[#allocation7 + $0x230] sm:$0xff] %v614
    %867 = vst [vmem:[#allocation7 + $0x238] sm:$0xff] %v615
    %868 = vst [vmem:[#allocation7 + $0x240] sm:$0xff] %v616
    %869 = vst [vmem:[#allocation7 + $0x248] sm:$0xff] %v617
    %870 = vst [vmem:[#allocation7 + $0x250] sm:$0xff] %v618
    %871 = vst [vmem:[#allocation7 + $0x258] sm:$0xff] %v619
    %872 = vst [vmem:[#allocation7 + $0x260] sm:$0xff] %v620
    %873 = vst [vmem:[#allocation7 + $0x268] sm:$0xff] %v621
    %874 = vst [vmem:[#allocation7 + $0x270] sm:$0xff] %v622
    %875 = vst [vmem:[#allocation7 + $0x278] sm:$0xff] %v623
    %876 = vst [vmem:[#allocation7 + $0x280] sm:$0xff] %v624
    %877 = vst [vmem:[#allocation7 + $0x288] sm:$0xff] %v625
    %878 = vst [vmem:[#allocation7 + $0x290] sm:$0xff] %v626
    %879 = vst [vmem:[#allocation7 + $0x298] sm:$0xff] %v627
    %880 = vst [vmem:[#allocation7 + $0x2a0] sm:$0xff] %v628
    %881 = vst [vmem:[#allocation7 + $0x2a8] sm:$0xff] %v629
    %882 = vst [vmem:[#allocation7 + $0x2b0] sm:$0xff] %v630
    %883 = vst [vmem:[#allocation7 + $0x2b8] sm:$0xff] %v631
    %884 = vst [vmem:[#allocation7 + $0x2c0] sm:$0xff] %v632
    %885 = vst [vmem:[#allocation7 + $0x2c8] sm:$0xff] %v633
    %886 = vst [vmem:[#allocation7 + $0x2d0] sm:$0xff] %v634
    %887 = vst [vmem:[#allocation7 + $0x2d8] sm:$0xff] %v635
    %888 = vst [vmem:[#allocation7 + $0x2e0] sm:$0xff] %v636
    %889 = vst [vmem:[#allocation7 + $0x2e8] sm:$0xff] %v637
    %890 = vst [vmem:[#allocation7 + $0x2f0] sm:$0xff] %v638
    %891 = vst [vmem:[#allocation7 + $0x2f8] sm:$0xff] %v639
    %892 = vst [vmem:[#allocation7 + $0x300] sm:$0xff] %v640
    %893 = vst [vmem:[#allocation7 + $0x308] sm:$0xff] %v641
    %894 = vst [vmem:[#allocation7 + $0x310] sm:$0xff] %v642
    %895 = vst [vmem:[#allocation7 + $0x318] sm:$0xff] %v643
    %896 = vst [vmem:[#allocation7 + $0x320] sm:$0xff] %v644
    %897 = vst [vmem:[#allocation7 + $0x328] sm:$0xff] %v645
    %898 = vst [vmem:[#allocation7 + $0x330] sm:$0xff] %v646
    %899 = vst [vmem:[#allocation7 + $0x338] sm:$0xff] %v647
    %900 = vst [vmem:[#allocation7 + $0x340] sm:$0xff] %v648
    %901 = vst [vmem:[#allocation7 + $0x348] sm:$0xff] %v649
    %902 = vst [vmem:[#allocation7 + $0x350] sm:$0xff] %v650
    %903 = vst [vmem:[#allocation7 + $0x358] sm:$0xff] %v651
    %904 = vst [vmem:[#allocation7 + $0x360] sm:$0xff] %v652
    %905 = vst [vmem:[#allocation7 + $0x368] sm:$0xff] %v653
    %906 = vst [vmem:[#allocation7 + $0x370] sm:$0xff] %v654
    %907 = vst [vmem:[#allocation7 + $0x378] sm:$0xff] %v655
    %908 = vst [vmem:[#allocation7 + $0x380] sm:$0xff] %v656
    %909 = vst [vmem:[#allocation7 + $0x388] sm:$0xff] %v657
    %910 = vst [vmem:[#allocation7 + $0x390] sm:$0xff] %v658
    %911 = vst [vmem:[#allocation7 + $0x398] sm:$0xff] %v659
    %912 = vst [vmem:[#allocation7 + $0x3a0] sm:$0xff] %v660
    %913 = vst [vmem:[#allocation7 + $0x3a8] sm:$0xff] %v661
    %914 = vst [vmem:[#allocation7 + $0x3b0] sm:$0xff] %v662
    %915 = vst [vmem:[#allocation7 + $0x3b8] sm:$0xff] %v663
    %916 = vst [vmem:[#allocation7 + $0x3c0] sm:$0xff] %v664
    %917 = vst [vmem:[#allocation7 + $0x3c8] sm:$0xff] %v665
    %918 = vst [vmem:[#allocation7 + $0x3d0] sm:$0xff] %v666
    %919 = vst [vmem:[#allocation7 + $0x3d8] sm:$0xff] %v667
    %920 = vst [vmem:[#allocation7 + $0x3e0] sm:$0xff] %v668
    %921 = vst [vmem:[#allocation7 + $0x3e8] sm:$0xff] %v669
    %922 = vst [vmem:[#allocation7 + $0x3f0] sm:$0xff] %v670
    %923 = vst [vmem:[#allocation7 + $0x3f8] sm:$0xff] %v671
    %924 = vst [vmem:[#allocation7 + $0x400] sm:$0xff] %v672
    %925 = vst [vmem:[#allocation7 + $0x408] sm:$0xff] %v673
    %926 = vst [vmem:[#allocation7 + $0x410] sm:$0xff] %v674
    %927 = vst [vmem:[#allocation7 + $0x418] sm:$0xff] %v675
    %928 = vst [vmem:[#allocation7 + $0x420] sm:$0xff] %v676
    %929 = vst [vmem:[#allocation7 + $0x428] sm:$0xff] %v677
    %930 = vst [vmem:[#allocation7 + $0x430] sm:$0xff] %v678
    %931 = vst [vmem:[#allocation7 + $0x438] sm:$0xff] %v679
    %932 = vst [vmem:[#allocation7 + $0x440] sm:$0xff] %v680
    %933 = vst [vmem:[#allocation7 + $0x448] sm:$0xff] %v681
    %934 = vst [vmem:[#allocation7 + $0x450] sm:$0xff] %v682
    %935 = vst [vmem:[#allocation7 + $0x458] sm:$0xff] %v683
    %936 = vst [vmem:[#allocation7 + $0x460] sm:$0xff] %v684
    %937 = vst [vmem:[#allocation7 + $0x468] sm:$0xff] %v685
    %938 = vst [vmem:[#allocation7 + $0x470] sm:$0xff] %v686
    %939 = vst [vmem:[#allocation7 + $0x478] sm:$0xff] %v687
    %940 = vst [vmem:[#allocation7 + $0x480] sm:$0xff] %v688
    %941 = vst [vmem:[#allocation7 + $0x488] sm:$0xff] %v689
    %942 = vst [vmem:[#allocation7 + $0x490] sm:$0xff] %v690
    %943 = vst [vmem:[#allocation7 + $0x498] sm:$0xff] %v691
    %944 = vst [vmem:[#allocation7 + $0x4a0] sm:$0xff] %v692
    %945 = vst [vmem:[#allocation7 + $0x4a8] sm:$0xff] %v693
    %946 = vst [vmem:[#allocation7 + $0x4b0] sm:$0xff] %v694
    %947 = vst [vmem:[#allocation7 + $0x4b8] sm:$0xff] %v695
    %948 = vst [vmem:[#allocation7 + $0x4c0] sm:$0xff] %v696
    %949 = vst [vmem:[#allocation7 + $0x4c8] sm:$0xff] %v697
    %950 = vst [vmem:[#allocation7 + $0x4d0] sm:$0xff] %v698
    %951 = vst [vmem:[#allocation7 + $0x4d8] sm:$0xff] %v699
    %952 = vst [vmem:[#allocation7 + $0x4e0] sm:$0xff] %v700
    %953 = vst [vmem:[#allocation7 + $0x4e8] sm:$0xff] %v701
    %954 = vst [vmem:[#allocation7 + $0x4f0] sm:$0xff] %v702
    %955 = vst [vmem:[#allocation7 + $0x4f8] sm:$0xff] %v703
    %956 = vst [vmem:[#allocation7 + $0x500] sm:$0xff] %v704
    %957 = vst [vmem:[#allocation7 + $0x508] sm:$0xff] %v705
    %958 = vst [vmem:[#allocation7 + $0x510] sm:$0xff] %v706
    %959 = vst [vmem:[#allocation7 + $0x518] sm:$0xff] %v707
    %960 = vst [vmem:[#allocation7 + $0x520] sm:$0xff] %v708
    %961 = vst [vmem:[#allocation7 + $0x528] sm:$0xff] %v709
    %962 = vst [vmem:[#allocation7 + $0x530] sm:$0xff] %v710
    %963 = vst [vmem:[#allocation7 + $0x538] sm:$0xff] %v711
    %964 = vst [vmem:[#allocation7 + $0x540] sm:$0xff] %v712
    %965 = vst [vmem:[#allocation7 + $0x548] sm:$0xff] %v713
    %966 = vst [vmem:[#allocation7 + $0x550] sm:$0xff] %v714
    %967 = vst [vmem:[#allocation7 + $0x558] sm:$0xff] %v715
    %968 = vst [vmem:[#allocation7 + $0x560] sm:$0xff] %v716
    %969 = vst [vmem:[#allocation7 + $0x568] sm:$0xff] %v717
    %970 = vst [vmem:[#allocation7 + $0x570] sm:$0xff] %v718
    %971 = vst [vmem:[#allocation7 + $0x578] sm:$0xff] %v719
    %972 = vst [vmem:[#allocation7 + $0x580] sm:$0xff] %v720
    %973 = vst [vmem:[#allocation7 + $0x588] sm:$0xff] %v721
    %974 = vst [vmem:[#allocation7 + $0x590] sm:$0xff] %v722
    %975 = vst [vmem:[#allocation7 + $0x598] sm:$0xff] %v723
    %976 = vst [vmem:[#allocation7 + $0x5a0] sm:$0xff] %v724
    %977 = vst [vmem:[#allocation7 + $0x5a8] sm:$0xff] %v725
    %978 = vst [vmem:[#allocation7 + $0x5b0] sm:$0xff] %v726
    %979 = vst [vmem:[#allocation7 + $0x5b8] sm:$0xff] %v727
    %980 = vst [vmem:[#allocation7 + $0x5c0] sm:$0xff] %v728
    %981 = vst [vmem:[#allocation7 + $0x5c8] sm:$0xff] %v729
    %982 = vst [vmem:[#allocation7 + $0x5d0] sm:$0xff] %v730
    %983 = vst [vmem:[#allocation7 + $0x5d8] sm:$0xff] %v731
    %984 = vst [vmem:[#allocation7 + $0x5e0] sm:$0xff] %v732
    %985 = vst [vmem:[#allocation7 + $0x5e8] sm:$0xff] %v733
    %986 = vst [vmem:[#allocation7 + $0x5f0] sm:$0xff] %v734
    %987 = vst [vmem:[#allocation7 + $0x5f8] sm:$0xff] %v735
    %988 = vst [vmem:[#allocation7 + $0x600] sm:$0xff] %v736
    %989 = vst [vmem:[#allocation7 + $0x608] sm:$0xff] %v737
    %990 = vst [vmem:[#allocation7 + $0x610] sm:$0xff] %v738
    %991 = vst [vmem:[#allocation7 + $0x618] sm:$0xff] %v739
    %992 = vst [vmem:[#allocation7 + $0x620] sm:$0xff] %v740
    %993 = vst [vmem:[#allocation7 + $0x628] sm:$0xff] %v741
    %994 = vst [vmem:[#allocation7 + $0x630] sm:$0xff] %v742
    %995 = vst [vmem:[#allocation7 + $0x638] sm:$0xff] %v743
    %996 = vst [vmem:[#allocation7 + $0x640] sm:$0xff] %v744
    %997 = vst [vmem:[#allocation7 + $0x648] sm:$0xff] %v745
    %998 = vst [vmem:[#allocation7 + $0x650] sm:$0xff] %v746
    %999 = vst [vmem:[#allocation7 + $0x658] sm:$0xff] %v747
    %1000 = vst [vmem:[#allocation7 + $0x660] sm:$0xff] %v748
    %1001 = vst [vmem:[#allocation7 + $0x668] sm:$0xff] %v749
    %1002 = vst [vmem:[#allocation7 + $0x670] sm:$0xff] %v750
    %1003 = vst [vmem:[#allocation7 + $0x678] sm:$0xff] %v751
    %1004 = vst [vmem:[#allocation7 + $0x680] sm:$0xff] %v752
    %1005 = vst [vmem:[#allocation7 + $0x688] sm:$0xff] %v753
    %1006 = vst [vmem:[#allocation7 + $0x690] sm:$0xff] %v754
    %1007 = vst [vmem:[#allocation7 + $0x698] sm:$0xff] %v755
    %1008 = vst [vmem:[#allocation7 + $0x6a0] sm:$0xff] %v756
    %1009 = vst [vmem:[#allocation7 + $0x6a8] sm:$0xff] %v757
    %1010 = vst [vmem:[#allocation7 + $0x6b0] sm:$0xff] %v758
    %1011 = vst [vmem:[#allocation7 + $0x6b8] sm:$0xff] %v759
    %1012 = vst [vmem:[#allocation7 + $0x6c0] sm:$0xff] %v760
    %1013 = vst [vmem:[#allocation7 + $0x6c8] sm:$0xff] %v761
    %1014 = vst [vmem:[#allocation7 + $0x6d0] sm:$0xff] %v762
    %1015 = vst [vmem:[#allocation7 + $0x6d8] sm:$0xff] %v763
    %1016 = vst [vmem:[#allocation7 + $0x6e0] sm:$0xff] %v764
    %1017 = vst [vmem:[#allocation7 + $0x6e8] sm:$0xff] %v765
    %1018 = vst [vmem:[#allocation7 + $0x6f0] sm:$0xff] %v766
    %1019 = vst [vmem:[#allocation7 + $0x6f8] sm:$0xff] %v767
    %1020 = vst [vmem:[#allocation7 + $0x700] sm:$0xff] %v768
    %1021 = vst [vmem:[#allocation7 + $0x708] sm:$0xff] %v769
    %1022 = vst [vmem:[#allocation7 + $0x710] sm:$0xff] %v770
    %1023 = vst [vmem:[#allocation7 + $0x718] sm:$0xff] %v771
    %1024 = vst [vmem:[#allocation7 + $0x720] sm:$0xff] %v772
    %1025 = vst [vmem:[#allocation7 + $0x728] sm:$0xff] %v773
    %1026 = vst [vmem:[#allocation7 + $0x730] sm:$0xff] %v774
    %1027 = vst [vmem:[#allocation7 + $0x738] sm:$0xff] %v775
    %1028 = vst [vmem:[#allocation7 + $0x740] sm:$0xff] %v776
    %1029 = vst [vmem:[#allocation7 + $0x748] sm:$0xff] %v777
    %1030 = vst [vmem:[#allocation7 + $0x750] sm:$0xff] %v778
    %1031 = vst [vmem:[#allocation7 + $0x758] sm:$0xff] %v779
    %1032 = vst [vmem:[#allocation7 + $0x760] sm:$0xff] %v780
    %1033 = vst [vmem:[#allocation7 + $0x768] sm:$0xff] %v781
    %1034 = vst [vmem:[#allocation7 + $0x770] sm:$0xff] %v782
    %1035 = vst [vmem:[#allocation7 + $0x778] sm:$0xff] %v783
    %1036 = vst [vmem:[#allocation7 + $0x780] sm:$0xff] %v784
    %1037 = vst [vmem:[#allocation7 + $0x788] sm:$0xff] %v785
    %1038 = vst [vmem:[#allocation7 + $0x790] sm:$0xff] %v786
    %1039 = vst [vmem:[#allocation7 + $0x798] sm:$0xff] %v787
    %1040 = vst [vmem:[#allocation7 + $0x7a0] sm:$0xff] %v788
    %1041 = vst [vmem:[#allocation7 + $0x7a8] sm:$0xff] %v789
    %1042 = vst [vmem:[#allocation7 + $0x7b0] sm:$0xff] %v790
    %1043 = vst [vmem:[#allocation7 + $0x7b8] sm:$0xff] %v791
    %1044 = vst [vmem:[#allocation7 + $0x7c0] sm:$0xff] %v792
    %1045 = vst [vmem:[#allocation7 + $0x7c8] sm:$0xff] %v793
    %1046 = vst [vmem:[#allocation7 + $0x7d0] sm:$0xff] %v794
    %1047 = vst [vmem:[#allocation7 + $0x7d8] sm:$0xff] %v795
    // Predicated region
    $region18: #{tpu_custom_call.1} parent=1 // pred_check
      _
    $region19: #{tpu_custom_call.1} parent=1 // pred_check_branch
      %1049 = sbr.rel (0) target = $region21
    $region20: #{tpu_custom_call.1} parent=1 // pred_region
      %s1051 = ssub.s32 32256, 32256
      %1052 = vsyncadd [#allocation4], %s1051
      %s1053 = sshll.u32 [#allocation7], 4
      %s1054 = int_to_ptr.vmem [resolvable:$true] %s1053
      %1059 = dma.vmem_to_hbm [thread:$0]  %s1054, 32256, %s2, [#allocation4], 384, 384, 24
    $region21: #{tpu_custom_call.1} parent=1 // pred_fallthru
      _
    // Predicated region
    $region22: #{tpu_custom_call.1} parent=1 // pred_check
      _
    $region23: #{tpu_custom_call.1} parent=1 // pred_check_branch
      %1061 = sbr.rel (0) target = $region25
    $region24: #{tpu_custom_call.1} parent=1 // pred_region
      %1062 = dma.done [#allocation4], 32256
    $region25: #{tpu_custom_call.1} parent=1 // pred_fallthru
      _
    %1063 = vsyncpa [#allocation3], 1
    %1064 = vsyncpa [#allocation6], 1
    %1065 = vsyncpa [#allocation4], 1

</llo_original>
